<compile_context>
chip_gen: v6e
topology: v6e:2x2x1
jax: 0.10.0
libtpu: 0.0.40
codegen_flags: <defaults>
</compile_context>

<pallas_src>
import functools

import jax
import jax.numpy as jnp
from jax import lax
from jax.experimental import pallas as pl
from jax.experimental.pallas import tpu as pltpu


def _hard_binary_conv_kernel(scale_ref, x_ref, w_ref, o_ref, acc_ref, *,
                             K, stride, Ho, Wo, KC):
    # scale_ref: SMEM (1, 1) f32          -- mean(|W|) over all weights.
    # x_ref:     VMEM (1, Hq, Wo, KC)     -- kw-stacked, W-strided padded image
    #                                        (bf16 or f32 compute dtype).
    # w_ref:     VMEM (K, KC, c_out)      -- sign(W), exactly +/-1, compute dtype.
    # o_ref:     VMEM (1, Ho*Wo, c_out)   -- flattened-spatial output slab.
    # acc_ref:   VMEM scratch (Ho*Wo, c_out) f32 accumulator.

    for kh in range(K):                       # K taps, static -> unrolled
        if stride == 1:
            patch = x_ref[0, pl.ds(kh, Ho), :, :]                       # (Ho, Wo, KC)
        else:
            patch = x_ref[0, pl.ds(kh, Ho, stride=stride), :, :]        # major-dim stride
        patch = patch.reshape(Ho * Wo, KC)    # collapse leading dims; lane dim untouched
        contrib = jnp.dot(patch, w_ref[kh], preferred_element_type=jnp.float32)
        if kh == 0:
            acc_ref[...] = contrib
        else:
            acc_ref[...] += contrib

    # scaling * (sum of sign(W) * x), scale applied once in f32.
    o_ref[0] = (acc_ref[...] * scale_ref[0, 0]).astype(o_ref.dtype)


def _ceil_to(v, m):
    return -(-v // m) * m


def hard_binary_conv(x, weights, *, C_in, c_out, kernel_size=3, stride=1,
                     padding=1, bias=None, use_bf16_mxu=True):
    """x: (B, C_in, H, W) f32 (NCHW, like PyTorch). weights: (C_in*c_out*K*K, 1)."""
    B, c_in_x, H, W = x.shape
    assert c_in_x == C_in
    K = kernel_size
    Ho = (H + 2 * padding - K) // stride + 1
    Wo = (W + 2 * padding - K) // stride + 1
    Hp, Wp = H + 2 * padding, W + 2 * padding
    Hq = (Ho - 1) * stride + K          # rows actually needed by the kernel
    KC = K * C_in

    compute_dtype = jnp.bfloat16 if use_bf16_mxu else x.dtype
    cbytes = jnp.dtype(compute_dtype).itemsize
    sub = 16 if cbytes == 2 else 8

    # ---- weight prep (once per call, not once per grid step) -----------------
    # real_weights = weights.view(c_out, C_in, K, K)
    w4 = weights.reshape(c_out, C_in, K, K)
    scale = jnp.mean(jnp.abs(w4)).astype(jnp.float32).reshape(1, 1)   # mean(|W|)
    # sign(W) laid out per-kh as ready (K*C_in, c_out) matmul operands:
    # (c_out, C_in, K, K) -> (K, K, C_in, c_out) -> (K, K*C_in, c_out)
    w_taps = jnp.transpose(jnp.sign(w4), (2, 3, 1, 0)).reshape(K, KC, c_out)
    w_taps = w_taps.astype(compute_dtype)                             # +/-1 exact in bf16

    # ---- activation layout plumbing (not compute) -----------------------------
    # NCHW -> NHWC, zero pad, stack the K kw-shifted copies along channels so
    # each kh tap is a single lane-contiguous (Ho*Wo, K*C_in) read, and apply
    # the W-stride here so the kernel never does sublane-strided reads.
    x_nhwc = jnp.transpose(x, (0, 2, 3, 1)).astype(compute_dtype)
    x_pad = jnp.pad(x_nhwc, ((0, 0), (padding, padding), (padding, padding), (0, 0)))
    Wq = Wp - K + 1
    x_stack = jnp.concatenate([x_pad[:, :, kw:kw + Wq, :] for kw in range(K)],
                              axis=-1)                                # (B, Hp, Wq, KC)
    if stride > 1:
        x_stack = x_stack[:, :, ::stride, :]
    x_stack = x_stack[:, :Hq, :Wo, :]                                 # (B, Hq, Wo, KC)

    # ---- explicit VMEM budget (double-buffered in/out blocks + scratch) -------
    x_blk = Hq * _ceil_to(Wo, sub) * _ceil_to(KC, 128) * cbytes
    w_blk = K * _ceil_to(KC, sub) * _ceil_to(c_out, 128) * cbytes
    o_blk = _ceil_to(Ho * Wo, 8) * _ceil_to(c_out, 128) * 4
    acc_blk = _ceil_to(Ho * Wo, 8) * _ceil_to(c_out, 128) * 4
    vmem_limit = 2 * (x_blk + o_blk) + 2 * w_blk + acc_blk + (4 << 20)
    vmem_limit = int(min(max(vmem_limit, 16 << 20), 56 << 20))        # stay under v7x 64MiB

    kernel = functools.partial(_hard_binary_conv_kernel, K=K, stride=stride,
                               Ho=Ho, Wo=Wo, KC=KC)

    out_flat = pl.pallas_call(
        kernel,
        out_shape=jax.ShapeDtypeStruct((B, Ho * Wo, c_out), x.dtype),
        grid_spec=pltpu.PrefetchScalarGridSpec(
            num_scalar_prefetch=0,
            grid=(B,),
            in_specs=[
                # mean(|W|) scalar, kept in SMEM.
                pl.BlockSpec(memory_space=pltpu.MemorySpace.SMEM),
                # One kw-stacked padded image per grid step.
                pl.BlockSpec((1, Hq, Wo, KC), lambda b: (b, 0, 0, 0)),
                # Sign weights: same block every step -> fetched once, VMEM-resident.
                pl.BlockSpec((K, KC, c_out), lambda b: (0, 0, 0)),
            ],
            out_specs=pl.BlockSpec((1, Ho * Wo, c_out), lambda b: (b, 0, 0)),
            scratch_shapes=[pltpu.VMEM((Ho * Wo, c_out), jnp.float32)],
        ),
        compiler_params=pltpu.CompilerParams(
            dimension_semantics=("parallel",),
            vmem_limit_bytes=vmem_limit,
        ),
    )(scale, x_stack, w_taps)

    # Free reshape of contiguous trailing dims, then back to NCHW like PyTorch.
    y = out_flat.reshape(B, Ho, Wo, c_out)
    y = jnp.transpose(y, (0, 3, 1, 2))
    if bias is not None:
        y = y + bias.reshape(1, c_out, 1, 1)
    return y


if __name__ == "__main__":
    key = jax.random.PRNGKey(0)
    B, C_in, c_out, H, W = 2, 4, 8, 16, 16
    K, stride, padding = 3, 1, 1

    k_x, k_w = jax.random.split(key)
    x = jax.random.normal(k_x, (B, C_in, H, W), dtype=jnp.float32)
    # Matches nn.Parameter(torch.rand((C_in*c_out*K*K, 1)) * 0.001)
    weights = jax.random.uniform(k_w, (C_in * c_out * K * K, 1),
                                 dtype=jnp.float32) * 0.001

    out = hard_binary_conv(x, weights, C_in=C_in, c_out=c_out,
                           kernel_size=K, stride=stride, padding=padding,
                           use_bf16_mxu=True)
    out = jax.block_until_ready(out)

    # Pure-JAX f32 reference of the PyTorch forward.
    w4 = weights.reshape(c_out, C_in, K, K)
    scaling = jnp.mean(jnp.abs(w4))
    bw_ref = scaling * jnp.sign(w4)
    ref = lax.conv_general_dilated(
        x, bw_ref,
        window_strides=(stride, stride),
        padding=((padding, padding), (padding, padding)),
        dimension_numbers=("NCHW", "OIHW", "NCHW"))

    assert out.shape == ref.shape and out.dtype == ref.dtype
    # bf16 is only used for activations on the MXU (weights are exact +/-1 and
    # the scale is applied in f32), so a modest tolerance suffices.
    assert jnp.allclose(out, ref, rtol=2e-2, atol=1e-4), \
        "kernel output mismatch vs reference"
    print("KERNEL_OK")
</pallas_src>

<mosaic_0001>
module attributes {stable_mosaic.version = 11 : i64} {
  func.func @_hard_binary_conv_kernel(%arg0: i32, %arg1: memref<1x1xf32, #tpu.memory_space<smem>>, %arg2: memref<1x18x16x12xbf16, #tpu.memory_space<vmem>>, %arg3: memref<3x12x8xbf16, #tpu.memory_space<vmem>>, %arg4: memref<1x256x8xf32, #tpu.memory_space<vmem>>, %arg5: memref<256x8xf32, #tpu.memory_space<vmem>>) attributes {dimension_semantics = [#tpu.dimension_semantics<parallel>], iteration_bounds = array<i64: 2>, scalar_prefetch = 0 : i64, scratch_operands = 1 : i64, tpu.core_type = #tpu.core_type<tc>, window_params = [{transform_indices = @transform_0, window_bounds = array<i64: 1, 1>}, {transform_indices = @transform_1, window_bounds = array<i64: 1, 18, 16, 12>}, {pipeline_mode = #tpu.pipeline_mode<synchronous>, transform_indices = @transform_2, window_bounds = array<i64: 3, 12, 8>}, {transform_indices = @transform_3, window_bounds = array<i64: 1, 256, 8>}]} {
    %c0 = arith.constant 0 : index
    %c0_0 = arith.constant 0 : index
    %c0_1 = arith.constant 0 : index
    %c0_2 = arith.constant 0 : index
    %0 = vector.load %arg2[%c0, %c0_0, %c0_1, %c0_2] : memref<1x18x16x12xbf16, #tpu.memory_space<vmem>>, vector<1x16x16x12xbf16>
    %1 = vector.shape_cast %0 : vector<1x16x16x12xbf16> to vector<16x16x12xbf16>
    %2 = vector.shape_cast %1 : vector<16x16x12xbf16> to vector<256x12xbf16>
    %c0_3 = arith.constant 0 : index
    %c0_4 = arith.constant 0 : index
    %c0_5 = arith.constant 0 : index
    %3 = vector.load %arg3[%c0_3, %c0_4, %c0_5] : memref<3x12x8xbf16, #tpu.memory_space<vmem>>, vector<1x12x8xbf16>
    %4 = vector.shape_cast %3 : vector<1x12x8xbf16> to vector<12x8xbf16>
    %cst = arith.constant dense<0.000000e+00> : vector<256x8xf32>
    %5 = tpu.matmul %2, %4, %cst {dimension_numbers = #tpu.dot_dimension_numbers<[1], [0], [0], [1], [0, 0, 1, 1], [], []>} : vector<256x12xbf16>, vector<12x8xbf16>, vector<256x8xf32> -> vector<256x8xf32>
    %c0_6 = arith.constant 0 : index
    %c0_7 = arith.constant 0 : index
    %6 = vector.load %arg5[%c0_6, %c0_7] : memref<256x8xf32, #tpu.memory_space<vmem>>, vector<256x8xf32>
    tpu.vector_store %arg5[%c0_6, %c0_7], %5 {strides = array<i32>} : memref<256x8xf32, #tpu.memory_space<vmem>>, vector<256x8xf32>,
    %c0_8 = arith.constant 0 : index
    %c1 = arith.constant 1 : index
    %c0_9 = arith.constant 0 : index
    %c0_10 = arith.constant 0 : index
    %7 = vector.load %arg2[%c0_8, %c1, %c0_9, %c0_10] : memref<1x18x16x12xbf16, #tpu.memory_space<vmem>>, vector<1x16x16x12xbf16>
    %8 = vector.shape_cast %7 : vector<1x16x16x12xbf16> to vector<16x16x12xbf16>
    %9 = vector.shape_cast %8 : vector<16x16x12xbf16> to vector<256x12xbf16>
    %c1_11 = arith.constant 1 : index
    %c0_12 = arith.constant 0 : index
    %c0_13 = arith.constant 0 : index
    %10 = vector.load %arg3[%c1_11, %c0_12, %c0_13] : memref<3x12x8xbf16, #tpu.memory_space<vmem>>, vector<1x12x8xbf16>
    %11 = vector.shape_cast %10 : vector<1x12x8xbf16> to vector<12x8xbf16>
    %cst_14 = arith.constant dense<0.000000e+00> : vector<256x8xf32>
    %12 = tpu.matmul %9, %11, %cst_14 {dimension_numbers = #tpu.dot_dimension_numbers<[1], [0], [0], [1], [0, 0, 1, 1], [], []>} : vector<256x12xbf16>, vector<12x8xbf16>, vector<256x8xf32> -> vector<256x8xf32>
    %c0_15 = arith.constant 0 : index
    %c0_16 = arith.constant 0 : index
    %13 = vector.load %arg5[%c0_15, %c0_16] : memref<256x8xf32, #tpu.memory_space<vmem>>, vector<256x8xf32>
    %14 = arith.addf %13, %12 : vector<256x8xf32>
    %c0_17 = arith.constant 0 : index
    %c0_18 = arith.constant 0 : index
    %15 = vector.load %arg5[%c0_17, %c0_18] : memref<256x8xf32, #tpu.memory_space<vmem>>, vector<256x8xf32>
    tpu.vector_store %arg5[%c0_17, %c0_18], %14 {strides = array<i32>} : memref<256x8xf32, #tpu.memory_space<vmem>>, vector<256x8xf32>,
    %c0_19 = arith.constant 0 : index
    %c2 = arith.constant 2 : index
    %c0_20 = arith.constant 0 : index
    %c0_21 = arith.constant 0 : index
    %16 = vector.load %arg2[%c0_19, %c2, %c0_20, %c0_21] : memref<1x18x16x12xbf16, #tpu.memory_space<vmem>>, vector<1x16x16x12xbf16>
    %17 = vector.shape_cast %16 : vector<1x16x16x12xbf16> to vector<16x16x12xbf16>
    %18 = vector.shape_cast %17 : vector<16x16x12xbf16> to vector<256x12xbf16>
    %c2_22 = arith.constant 2 : index
    %c0_23 = arith.constant 0 : index
    %c0_24 = arith.constant 0 : index
    %19 = vector.load %arg3[%c2_22, %c0_23, %c0_24] : memref<3x12x8xbf16, #tpu.memory_space<vmem>>, vector<1x12x8xbf16>
    %20 = vector.shape_cast %19 : vector<1x12x8xbf16> to vector<12x8xbf16>
    %cst_25 = arith.constant dense<0.000000e+00> : vector<256x8xf32>
    %21 = tpu.matmul %18, %20, %cst_25 {dimension_numbers = #tpu.dot_dimension_numbers<[1], [0], [0], [1], [0, 0, 1, 1], [], []>} : vector<256x12xbf16>, vector<12x8xbf16>, vector<256x8xf32> -> vector<256x8xf32>
    %c0_26 = arith.constant 0 : index
    %c0_27 = arith.constant 0 : index
    %22 = vector.load %arg5[%c0_26, %c0_27] : memref<256x8xf32, #tpu.memory_space<vmem>>, vector<256x8xf32>
    %23 = arith.addf %22, %21 : vector<256x8xf32>
    %c0_28 = arith.constant 0 : index
    %c0_29 = arith.constant 0 : index
    %24 = vector.load %arg5[%c0_28, %c0_29] : memref<256x8xf32, #tpu.memory_space<vmem>>, vector<256x8xf32>
    tpu.vector_store %arg5[%c0_28, %c0_29], %23 {strides = array<i32>} : memref<256x8xf32, #tpu.memory_space<vmem>>, vector<256x8xf32>,
    %c0_30 = arith.constant 0 : index
    %c0_31 = arith.constant 0 : index
    %25 = vector.load %arg5[%c0_30, %c0_31] : memref<256x8xf32, #tpu.memory_space<vmem>>, vector<256x8xf32>
    %c0_32 = arith.constant 0 : index
    %c0_33 = arith.constant 0 : index
    %26 = memref.load %arg1[%c0_32, %c0_33] : memref<1x1xf32, #tpu.memory_space<smem>>
    %27 = vector.broadcast %26 : f32 to vector<256x8xf32>
    %28 = arith.mulf %25, %27 : vector<256x8xf32>
    %c0_34 = arith.constant 0 : index
    %c0_35 = arith.constant 0 : index
    %c0_36 = arith.constant 0 : index
    %29 = vector.load %arg4[%c0_34, %c0_35, %c0_36] : memref<1x256x8xf32, #tpu.memory_space<vmem>>, vector<1x256x8xf32>
    %30 = vector.shape_cast %29 : vector<1x256x8xf32> to vector<256x8xf32>
    %31 = vector.shape_cast %28 : vector<256x8xf32> to vector<1x256x8xf32>
    tpu.vector_store %arg4[%c0_34, %c0_35, %c0_36], %31 {strides = array<i32>} : memref<1x256x8xf32, #tpu.memory_space<vmem>>, vector<1x256x8xf32>,
    return
  }
  func.func @transform_0(%arg0: i32) -> (i32, i32) {
    %c0_i32 = arith.constant 0 : i32
    %c0_i32_0 = arith.constant 0 : i32
    %c0_i32_1 = arith.constant 0 : i32
    return %c0_i32, %c0_i32_0 : i32, i32
  }
  func.func @transform_1(%arg0: i32) -> (i32, i32, i32, i32) {
    %c0_i32 = arith.constant 0 : i32
    %c0_i32_0 = arith.constant 0 : i32
    %c0_i32_1 = arith.constant 0 : i32
    %c0_i32_2 = arith.constant 0 : i32
    return %arg0, %c0_i32, %c0_i32_0, %c0_i32_1 : i32, i32, i32, i32
  }
  func.func @transform_2(%arg0: i32) -> (i32, i32, i32) {
    %c0_i32 = arith.constant 0 : i32
    %c0_i32_0 = arith.constant 0 : i32
    %c0_i32_1 = arith.constant 0 : i32
    %c0_i32_2 = arith.constant 0 : i32
    return %c0_i32, %c0_i32_0, %c0_i32_1 : i32, i32, i32
  }
  func.func @transform_3(%arg0: i32) -> (i32, i32, i32) {
    %c0_i32 = arith.constant 0 : i32
    %c0_i32_0 = arith.constant 0 : i32
    %c0_i32_1 = arith.constant 0 : i32
    return %arg0, %c0_i32, %c0_i32_0 : i32, i32, i32
  }
}

</mosaic_0001>

<llo_original>
// kernel: tpu_custom_call.1
$region0: #{tpu_custom_call.1}
  #allocation0 [shape = 'u32[]', space=smem, size = 0x4, offset = 0x4, fixed_abs, tag = 'smem constant byte address 0x4 - core index']
  #allocation1 [shape = 'u32[144,128]{1,0:T(1,128)}', space=vmem, size = 0x12000, scoped, tag = 'internal scratch']
  #allocation2 [shape = 'f32[256,8]{1,0:T(8,128)}', space=vmem, size = 0x20000, scoped, tag = 'scratch operand']
  #allocation3 [shape = 'f32[1,1]{1,0:T(1,128)S(6)}', space=smem, size = 0x200, scoped, tag = 'scoped memory for tpu_custom_call.1']
  %s0 = inlined_call_operand.<no memory space> [shape: f32[1,1], index: 0, kind: input, shape index: {}]
  %s1 = inlined_call_operand.vmem [shape: bf16[2,18,16,12], index: 1, kind: input, shape index: {}]
  %s2 = inlined_call_operand.vmem [shape: bf16[3,12,8], index: 2, kind: input, shape index: {}]
  %s3 = inlined_call_operand.vmem [shape: f32[2,256,8], index: 3, kind: output, shape index: {}]
  %s4 = sld [smem:[#allocation0]]
  $region45: #{tpu_custom_call.1} parent=0
    _
  %s6 = ssub.s32 1, %s4
  %s7 = scalar_select 0, %s6, %s4
  %8 = sst [smem:[#allocation3]] %s0
  loop: start=0, step=1, limit=4
  $region2: #{tpu_custom_call.1} parent=0 // loop_pre_header
    _
  $region3: #{tpu_custom_call.1} parent=0 // loop_header
    %s10 = sphi 0, %s14
    %p11 = scmp.ge.s32.totalorder %s10, 4
    %s18 = sphi 0, %s18
    %s20 = sphi 0, %s18
    %s21 = sphi 0, %s20
    %s35 = sphi 0, %s21
    %s41 = sphi 0, %s43
    %s44 = sphi 0, %s41
    %s45 = sphi 0, %s44
    %s61 = sphi 0, %s45
    %s65 = sphi 0, %s65
    %s67 = sphi 0, %s65
    %s68 = sphi 0, %s67
    %s82 = sphi 0, %s68
    %s88 = sphi 0, %s90
    %s91 = sphi 0, %s88
    %s92 = sphi 0, %s91
    %s108 = sphi 0, %s92
  $region4: #{tpu_custom_call.1} parent=0 // loop_header_branch
    %13 = sbr.rel (%p11) target = $region8
  $region5: #{tpu_custom_call.1} parent=0 // loop_body
    %s15 = ssub.s32 %s10, 1
    %s16 = ssub.s32 %s10, 2
    %s17 = sadd.s32 %s10, 1
    %s19 = sadd.s32 %s18, 1
    %p22 = scmp.eq.s32.totalorder %s10, 1
    %p23 = scmp.ne.s32.totalorder %s18, %s20
    %p24 = scmp.eq.s32.totalorder %s10, 0
    %p25 = por %p23, %p24
    %p26 = scmp.ne.s32.totalorder %s18, %s20
    %p27 = scmp.eq.s32.totalorder %s15, 1
    %p28 = por %p26, %p27
    %p29 = scmp.ne.s32.totalorder %s20, %s21
    %p30 = scmp.eq.s32.totalorder %s15, 0
    %p31 = por %p29, %p30
    %p32 = scmp.ne.s32.totalorder %s20, %s21
    %p33 = scmp.eq.s32.totalorder %s16, 1
    %p34 = por %p32, %p33
    %p36 = scmp.ne.s32.totalorder %s21, %s35
    %p37 = scmp.eq.s32.totalorder %s16, 0
    %p38 = por %p36, %p37
    %s39 = ssub.s32 %s10, %s17
    %p40 = scmp.eq.s32.totalorder %s39, 0
    %s42 = sadd.s32 %s41, 1
    %s43 = scalar_select %p40, %s41, %s42
    %p46 = pneg %p40
    %p47 = scmp.eq.s32.totalorder %s10, 1
    %p48 = por %p46, %p47
    %p49 = scmp.ne.s32.totalorder %s41, %s44
    %p50 = scmp.eq.s32.totalorder %s10, 0
    %p51 = por %p49, %p50
    %p52 = scmp.ne.s32.totalorder %s41, %s44
    %p53 = scmp.eq.s32.totalorder %s15, 1
    %p54 = por %p52, %p53
    %p55 = scmp.ne.s32.totalorder %s44, %s45
    %p56 = scmp.eq.s32.totalorder %s15, 0
    %p57 = por %p55, %p56
    %p58 = scmp.ne.s32.totalorder %s44, %s45
    %p59 = scmp.eq.s32.totalorder %s16, 1
    %p60 = por %p58, %p59
    %p62 = scmp.ne.s32.totalorder %s45, %s61
    %p63 = scmp.eq.s32.totalorder %s16, 0
    %p64 = por %p62, %p63
    %s66 = sadd.s32 %s65, 1
    %p69 = scmp.eq.s32.totalorder %s10, 1
    %p70 = scmp.ne.s32.totalorder %s65, %s67
    %p71 = scmp.eq.s32.totalorder %s10, 0
    %p72 = por %p70, %p71
    %p73 = scmp.ne.s32.totalorder %s65, %s67
    %p74 = scmp.eq.s32.totalorder %s15, 1
    %p75 = por %p73, %p74
    %p76 = scmp.ne.s32.totalorder %s67, %s68
    %p77 = scmp.eq.s32.totalorder %s15, 0
    %p78 = por %p76, %p77
    %p79 = scmp.ne.s32.totalorder %s67, %s68
    %p80 = scmp.eq.s32.totalorder %s16, 1
    %p81 = por %p79, %p80
    %p83 = scmp.ne.s32.totalorder %s68, %s82
    %p84 = scmp.eq.s32.totalorder %s16, 0
    %p85 = por %p83, %p84
    %s86 = ssub.s32 %s10, %s17
    %p87 = scmp.eq.s32.totalorder %s86, 0
    %s89 = sadd.s32 %s88, 1
    %s90 = scalar_select %p87, %s88, %s89
    %p93 = pneg %p87
    %p94 = scmp.eq.s32.totalorder %s10, 1
    %p95 = por %p93, %p94
    %p96 = scmp.ne.s32.totalorder %s88, %s91
    %p97 = scmp.eq.s32.totalorder %s10, 0
    %p98 = por %p96, %p97
    %p99 = scmp.ne.s32.totalorder %s88, %s91
    %p100 = scmp.eq.s32.totalorder %s15, 1
    %p101 = por %p99, %p100
    %p102 = scmp.ne.s32.totalorder %s91, %s92
    %p103 = scmp.eq.s32.totalorder %s15, 0
    %p104 = por %p102, %p103
    %p105 = scmp.ne.s32.totalorder %s91, %s92
    %p106 = scmp.eq.s32.totalorder %s16, 1
    %p107 = por %p105, %p106
    %p109 = scmp.ne.s32.totalorder %s92, %s108
    %p110 = scmp.eq.s32.totalorder %s16, 0
    %p111 = por %p109, %p110
    %p112 = scmp.le.s32.totalorder 1, %s10
    %p113 = scmp.lt.s32.totalorder %s10, 3
    %p114 = pnand %p112, %p113
    %p115 = pneg %p114
    // Predicated region
    $region9: #{tpu_custom_call.1} parent=5 // pred_check
      _
    $region10: #{tpu_custom_call.1} parent=5 // pred_check_branch
      %117 = sbr.rel (%p114) target = $region12
    $region11: #{tpu_custom_call.1} parent=5 // pred_region
      %s118 = ssub.s32 %s10, 1
      // Predicated region
      $region13: #{tpu_custom_call.1} parent=11 // pred_check
        %p119 = pneg %p31
      $region14: #{tpu_custom_call.1} parent=11 // pred_check_branch
        %121 = sbr.rel (%p119) target = $region16
      $region15: #{tpu_custom_call.1} parent=11 // pred_region
        _
      $region16: #{tpu_custom_call.1} parent=11 // pred_fallthru
        _
      // Predicated region
      $region17: #{tpu_custom_call.1} parent=11 // pred_check
        %p122 = pneg %p78
      $region18: #{tpu_custom_call.1} parent=11 // pred_check_branch
        %124 = sbr.rel (%p122) target = $region20
      $region19: #{tpu_custom_call.1} parent=11 // pred_region
        _
      $region20: #{tpu_custom_call.1} parent=11 // pred_fallthru
        _
    $region12: #{tpu_custom_call.1} parent=5 // pred_fallthru
      _
    %p125 = scmp.lt.s32.totalorder %s10, 2
    // Predicated region
    $region21: #{tpu_custom_call.1} parent=5 // pred_check
      %p126 = pneg %p125
    $region22: #{tpu_custom_call.1} parent=5 // pred_check_branch
      %128 = sbr.rel (%p126) target = $region24
    $region23: #{tpu_custom_call.1} parent=5 // pred_region
      // Predicated region
      $region25: #{tpu_custom_call.1} parent=23 // pred_check
        %p129 = pneg %p51
      $region26: #{tpu_custom_call.1} parent=23 // pred_check_branch
        %131 = sbr.rel (%p129) target = $region28
      $region27: #{tpu_custom_call.1} parent=23 // pred_region
        %p132 = scmp.lt.s32.totalorder %s10, 1
        %s133 = scalar_select %p132, %s10, 1
        %s134 = smul.addr %s133, 36
        %s135 = smul.addr %s134, 4
        %s136 = scalar_lea.vmem %s1, %s135
      $region28: #{tpu_custom_call.1} parent=23 // pred_fallthru
        _
    $region24: #{tpu_custom_call.1} parent=5 // pred_fallthru
      _
    %p137 = scmp.le.s32.totalorder 1, %s10
    %p138 = scmp.lt.s32.totalorder %s10, 3
    %p139 = pnand %p137, %p138
    %p140 = pneg %p139
    // Predicated region
    $region29: #{tpu_custom_call.1} parent=5 // pred_check
      _
    $region30: #{tpu_custom_call.1} parent=5 // pred_check_branch
      %142 = sbr.rel (%p139) target = $region32
    $region31: #{tpu_custom_call.1} parent=5 // pred_region
      %s143 = ssub.s32 %s10, 1
      %p144 = pneg %p31
      %p145 = pneg %p28
      %p146 = scmp.lt.s32.totalorder %s15, 1
      %s147 = scalar_select %p146, %s15, 1
      %s148 = smul.addr %s147, 36
      %s149 = smul.addr %s148, 4
      %s150 = scalar_lea.vmem %s1, %s149
      %p151 = pneg %p57
      %p152 = pneg %p54
      %p153 = pneg %p78
      %p154 = pneg %p75
      %p155 = pneg %p104
      %p156 = pneg %p101
      %p157 = scmp.lt.s32.totalorder %s15, 1
      %s158 = scalar_select %p157, %s15, 1
      %s159 = smul.addr %s158, 32
      %s160 = smul.addr %s159, 8
      %s161 = scalar_lea.vmem %s3, %s160
      %p162 = scmp.lt.s32.totalorder %s15, 1
      %s163 = scalar_select %p162, %s15, 1
      %s164 = smul.addr %s163, 36
      %s165 = smul.addr %s164, 4
      %s166 = scalar_lea.vmem %s1, %s165
      %p167 = scmp.lt.s32.totalorder %s15, 1
      %s168 = scalar_select %p167, %s15, 1
      %s169 = smul.addr %s168, 32
      %s170 = smul.addr %s169, 8
      %s171 = scalar_lea.vmem %s3, %s170
      %v173 = vld [vmem:[%s166] sm:$0xf]
      %v174 = vld [vmem:[%s166 + $0x4] sm:$0xf]
      %v175 = vld [vmem:[%s166 + $0x8] sm:$0xf]
      %v176 = vld [vmem:[%s166 + $0xc] sm:$0xf]
      %v177 = vld [vmem:[%s166 + $0x10] sm:$0xf]
      %v178 = vld [vmem:[%s166 + $0x14] sm:$0xf]
      %v179 = vld [vmem:[%s166 + $0x18] sm:$0xf]
      %v180 = vld [vmem:[%s166 + $0x1c] sm:$0xf]
      %v181 = vld [vmem:[%s166 + $0x20] sm:$0xf]
      %v182 = vld [vmem:[%s166 + $0x24] sm:$0xf]
      %v183 = vld [vmem:[%s166 + $0x28] sm:$0xf]
      %v184 = vld [vmem:[%s166 + $0x2c] sm:$0xf]
      %v185 = vld [vmem:[%s166 + $0x30] sm:$0xf]
      %v186 = vld [vmem:[%s166 + $0x34] sm:$0xf]
      %v187 = vld [vmem:[%s166 + $0x38] sm:$0xf]
      %v188 = vld [vmem:[%s166 + $0x3c] sm:$0xf]
      %v189 = vld [vmem:[%s166 + $0x40] sm:$0xf]
      %v190 = vld [vmem:[%s166 + $0x44] sm:$0xf]
      %v191 = vld [vmem:[%s166 + $0x48] sm:$0xf]
      %v192 = vld [vmem:[%s166 + $0x4c] sm:$0xf]
      %v193 = vld [vmem:[%s166 + $0x50] sm:$0xf]
      %v194 = vld [vmem:[%s166 + $0x54] sm:$0xf]
      %v195 = vld [vmem:[%s166 + $0x58] sm:$0xf]
      %v196 = vld [vmem:[%s166 + $0x5c] sm:$0xf]
      %v197 = vld [vmem:[%s166 + $0x60] sm:$0xf]
      %v198 = vld [vmem:[%s166 + $0x64] sm:$0xf]
      %v199 = vld [vmem:[%s166 + $0x68] sm:$0xf]
      %v200 = vld [vmem:[%s166 + $0x6c] sm:$0xf]
      %v201 = vld [vmem:[%s166 + $0x70] sm:$0xf]
      %v202 = vld [vmem:[%s166 + $0x74] sm:$0xf]
      %v203 = vld [vmem:[%s166 + $0x78] sm:$0xf]
      %v204 = vld [vmem:[%s166 + $0x7c] sm:$0xf]
      %v205 = vld [vmem:[%s2] sm:$0xf]
      %v206 = vld [vmem:[%s2 + $0x4] sm:$0x3]
      %v239 = vunpack.c.l.b16 %v173
      %v240 = vunpack.c.l.b16 %v174
      %v241 = vunpack.c.l.b16 %v175
      %v242 = vunpack.c.l.b16 %v176
      %v243 = vunpack.c.l.b16 %v177
      %v244 = vunpack.c.l.b16 %v178
      %v245 = vunpack.c.l.b16 %v179
      %v246 = vunpack.c.l.b16 %v180
      %v247 = vunpack.c.l.b16 %v181
      %v248 = vunpack.c.l.b16 %v182
      %v249 = vunpack.c.l.b16 %v183
      %v250 = vunpack.c.l.b16 %v184
      %v251 = vunpack.c.l.b16 %v185
      %v252 = vunpack.c.l.b16 %v186
      %v253 = vunpack.c.l.b16 %v187
      %v254 = vunpack.c.l.b16 %v188
      %v255 = vunpack.c.l.b16 %v189
      %v256 = vunpack.c.l.b16 %v190
      %v257 = vunpack.c.l.b16 %v191
      %v258 = vunpack.c.l.b16 %v192
      %v259 = vunpack.c.l.b16 %v193
      %v260 = vunpack.c.l.b16 %v194
      %v261 = vunpack.c.l.b16 %v195
      %v262 = vunpack.c.l.b16 %v196
      %v263 = vunpack.c.l.b16 %v197
      %v264 = vunpack.c.l.b16 %v198
      %v265 = vunpack.c.l.b16 %v199
      %v266 = vunpack.c.l.b16 %v200
      %v267 = vunpack.c.l.b16 %v201
      %v268 = vunpack.c.l.b16 %v202
      %v269 = vunpack.c.l.b16 %v203
      %v270 = vunpack.c.l.b16 %v204
      %v271 = vpack.c.b16 %v240, %v239
      %v272 = vpack.c.b16 %v242, %v241
      %v273 = vpack.c.b16 %v244, %v243
      %v274 = vpack.c.b16 %v246, %v245
      %v275 = vpack.c.b16 %v248, %v247
      %v276 = vpack.c.b16 %v250, %v249
      %v277 = vpack.c.b16 %v252, %v251
      %v278 = vpack.c.b16 %v254, %v253
      %v279 = vpack.c.b16 %v256, %v255
      %v280 = vpack.c.b16 %v258, %v257
      %v281 = vpack.c.b16 %v260, %v259
      %v282 = vpack.c.b16 %v262, %v261
      %v283 = vpack.c.b16 %v264, %v263
      %v284 = vpack.c.b16 %v266, %v265
      %v285 = vpack.c.b16 %v268, %v267
      %v286 = vpack.c.b16 %v270, %v269
      %v289 = vunpack.c.l.b16 %v205
      %v290 = vunpack.c.l.b16 %v206
      %v291 = vpack.c.b16 %v290, %v289
      %vm292 = vcmask 97280
      %v294 = vsel %vm292, %v271, 0
      %v297 = vsel %vm292, %v272, 0
      %v300 = vsel %vm292, %v273, 0
      %v303 = vsel %vm292, %v274, 0
      %v306 = vsel %vm292, %v275, 0
      %v309 = vsel %vm292, %v276, 0
      %v312 = vsel %vm292, %v277, 0
      %v315 = vsel %vm292, %v278, 0
      %v318 = vsel %vm292, %v279, 0
      %v321 = vsel %vm292, %v280, 0
      %v324 = vsel %vm292, %v281, 0
      %v327 = vsel %vm292, %v282, 0
      %v330 = vsel %vm292, %v283, 0
      %v333 = vsel %vm292, %v284, 0
      %v336 = vsel %vm292, %v285, 0
      %v339 = vsel %vm292, %v286, 0
      %vm341 = vcmask 1045504
      %v343 = vsel %vm341, %v291, 0
      %345 = vmatprep.subr.bf16.mxu0 0
      %346 = vmatpush1.bf16.msra.mxu0 0
      %347 = vmatprep.subr.bf16.mxu0 0
      %348 = vmatpush1.bf16.msra.mxu0 0
      %349 = vmatprep.subr.bf16.mxu0 0
      %350 = vmatpush1.bf16.msra.mxu0 0
      %351 = vmatprep.subr.bf16.mxu0 0
      %352 = vmatpush1.bf16.msra.mxu0 0
      %353 = vmatprep.subr.bf16.mxu0 0
      %354 = vmatpush1.bf16.msra.mxu0 0
      %355 = vmatprep.subr.bf16.mxu0 0
      %356 = vmatpush1.bf16.msra.mxu0 0
      %357 = vmatprep.subr.bf16.mxu0 0
      %358 = vmatpush1.bf16.msra.mxu0 0
      %359 = vmatprep.subr.bf16.mxu0 0
      %360 = vmatpush1.bf16.msra.mxu0 %v343
      %361 = vmatprep.subr.bf16.mxu0 0
      %362 = vmatpush2.bf16.msra.mxu0 0
      %363 = vmatprep.subr.bf16.mxu0 0
      %364 = vmatpush2.bf16.msra.mxu0 0
      %365 = vmatprep.subr.bf16.mxu0 0
      %366 = vmatpush2.bf16.msra.mxu0 0
      %367 = vmatprep.subr.bf16.mxu0 0
      %368 = vmatpush2.bf16.msra.mxu0 0
      %369 = vmatprep.subr.bf16.mxu0 0
      %370 = vmatpush2.bf16.msra.mxu0 0
      %371 = vmatprep.subr.bf16.mxu0 0
      %372 = vmatpush2.bf16.msra.mxu0 0
      %373 = vmatprep.subr.bf16.mxu0 0
      %374 = vmatpush2.bf16.msra.mxu0 0
      %375 = vmatprep.subr.bf16.mxu0 0
      %376 = vmatpush2.bf16.msra.mxu0 0
      %377 = vmatprep.mubr.bf16.mxu0 0
      %378 = vmatmul.mubr.bf16.gmra.mxu0 %v294
      %v379 = vpop.f32.mrf.mxu0
      %v380 = vadd.f32 0.0, %v379
      %v381 = vpop.f32.mrf.mxu0
      %v382 = vpop.f32.mrf.mxu0
      %v383 = vadd.f32 0.0, %v382
      %v384 = vpop.f32.mrf.mxu0
      %385 = vmatprep.mubr.bf16.mxu0 0
      %386 = vmatmul.mubr.bf16.gmra.mxu0 %v297
      %v387 = vpop.f32.mrf.mxu0
      %v388 = vadd.f32 0.0, %v387
      %v389 = vpop.f32.mrf.mxu0
      %v390 = vpop.f32.mrf.mxu0
      %v391 = vadd.f32 0.0, %v390
      %v392 = vpop.f32.mrf.mxu0
      %393 = vmatprep.mubr.bf16.mxu0 0
      %394 = vmatmul.mubr.bf16.gmra.mxu0 %v300
      %v395 = vpop.f32.mrf.mxu0
      %v396 = vadd.f32 0.0, %v395
      %v397 = vpop.f32.mrf.mxu0
      %v398 = vpop.f32.mrf.mxu0
      %v399 = vadd.f32 0.0, %v398
      %v400 = vpop.f32.mrf.mxu0
      %401 = vmatprep.mubr.bf16.mxu0 0
      %402 = vmatmul.mubr.bf16.gmra.mxu0 %v303
      %v403 = vpop.f32.mrf.mxu0
      %v404 = vadd.f32 0.0, %v403
      %v405 = vpop.f32.mrf.mxu0
      %v406 = vpop.f32.mrf.mxu0
      %v407 = vadd.f32 0.0, %v406
      %v408 = vpop.f32.mrf.mxu0
      %409 = vmatprep.mubr.bf16.mxu0 0
      %410 = vmatmul.mubr.bf16.gmra.mxu0 %v306
      %v411 = vpop.f32.mrf.mxu0
      %v412 = vadd.f32 0.0, %v411
      %v413 = vpop.f32.mrf.mxu0
      %v414 = vpop.f32.mrf.mxu0
      %v415 = vadd.f32 0.0, %v414
      %v416 = vpop.f32.mrf.mxu0
      %417 = vmatprep.mubr.bf16.mxu0 0
      %418 = vmatmul.mubr.bf16.gmra.mxu0 %v309
      %v419 = vpop.f32.mrf.mxu0
      %v420 = vadd.f32 0.0, %v419
      %v421 = vpop.f32.mrf.mxu0
      %v422 = vpop.f32.mrf.mxu0
      %v423 = vadd.f32 0.0, %v422
      %v424 = vpop.f32.mrf.mxu0
      %425 = vmatprep.mubr.bf16.mxu0 0
      %426 = vmatmul.mubr.bf16.gmra.mxu0 %v312
      %v427 = vpop.f32.mrf.mxu0
      %v428 = vadd.f32 0.0, %v427
      %v429 = vpop.f32.mrf.mxu0
      %v430 = vpop.f32.mrf.mxu0
      %v431 = vadd.f32 0.0, %v430
      %v432 = vpop.f32.mrf.mxu0
      %433 = vmatprep.mubr.bf16.mxu0 0
      %434 = vmatmul.mubr.bf16.gmra.mxu0 %v315
      %v435 = vpop.f32.mrf.mxu0
      %v436 = vadd.f32 0.0, %v435
      %v437 = vpop.f32.mrf.mxu0
      %v438 = vpop.f32.mrf.mxu0
      %v439 = vadd.f32 0.0, %v438
      %v440 = vpop.f32.mrf.mxu0
      %441 = vmatprep.mubr.bf16.mxu0 0
      %442 = vmatmul.mubr.bf16.gmra.mxu0 %v318
      %v443 = vpop.f32.mrf.mxu0
      %v444 = vadd.f32 0.0, %v443
      %v445 = vpop.f32.mrf.mxu0
      %v446 = vpop.f32.mrf.mxu0
      %v447 = vadd.f32 0.0, %v446
      %v448 = vpop.f32.mrf.mxu0
      %449 = vmatprep.mubr.bf16.mxu0 0
      %450 = vmatmul.mubr.bf16.gmra.mxu0 %v321
      %v451 = vpop.f32.mrf.mxu0
      %v452 = vadd.f32 0.0, %v451
      %v453 = vpop.f32.mrf.mxu0
      %v454 = vpop.f32.mrf.mxu0
      %v455 = vadd.f32 0.0, %v454
      %v456 = vpop.f32.mrf.mxu0
      %457 = vmatprep.mubr.bf16.mxu0 0
      %458 = vmatmul.mubr.bf16.gmra.mxu0 %v324
      %v459 = vpop.f32.mrf.mxu0
      %v460 = vadd.f32 0.0, %v459
      %v461 = vpop.f32.mrf.mxu0
      %v462 = vpop.f32.mrf.mxu0
      %v463 = vadd.f32 0.0, %v462
      %v464 = vpop.f32.mrf.mxu0
      %465 = vmatprep.mubr.bf16.mxu0 0
      %466 = vmatmul.mubr.bf16.gmra.mxu0 %v327
      %v467 = vpop.f32.mrf.mxu0
      %v468 = vadd.f32 0.0, %v467
      %v469 = vpop.f32.mrf.mxu0
      %v470 = vpop.f32.mrf.mxu0
      %v471 = vadd.f32 0.0, %v470
      %v472 = vpop.f32.mrf.mxu0
      %473 = vmatprep.mubr.bf16.mxu0 0
      %474 = vmatmul.mubr.bf16.gmra.mxu0 %v330
      %v475 = vpop.f32.mrf.mxu0
      %v476 = vadd.f32 0.0, %v475
      %v477 = vpop.f32.mrf.mxu0
      %v478 = vpop.f32.mrf.mxu0
      %v479 = vadd.f32 0.0, %v478
      %v480 = vpop.f32.mrf.mxu0
      %481 = vmatprep.mubr.bf16.mxu0 0
      %482 = vmatmul.mubr.bf16.gmra.mxu0 %v333
      %v483 = vpop.f32.mrf.mxu0
      %v484 = vadd.f32 0.0, %v483
      %v485 = vpop.f32.mrf.mxu0
      %v486 = vpop.f32.mrf.mxu0
      %v487 = vadd.f32 0.0, %v486
      %v488 = vpop.f32.mrf.mxu0
      %489 = vmatprep.mubr.bf16.mxu0 0
      %490 = vmatmul.mubr.bf16.gmra.mxu0 %v336
      %v491 = vpop.f32.mrf.mxu0
      %v492 = vadd.f32 0.0, %v491
      %v493 = vpop.f32.mrf.mxu0
      %v494 = vpop.f32.mrf.mxu0
      %v495 = vadd.f32 0.0, %v494
      %v496 = vpop.f32.mrf.mxu0
      %497 = vmatprep.mubr.bf16.mxu0 0
      %498 = vmatmul.mubr.bf16.gmra.mxu0 %v339
      %v499 = vpop.f32.mrf.mxu0
      %v500 = vadd.f32 0.0, %v499
      %v501 = vpop.f32.mrf.mxu0
      %v502 = vpop.f32.mrf.mxu0
      %v503 = vadd.f32 0.0, %v502
      %v504 = vpop.f32.mrf.mxu0
      %505 = vdwg.mxu0
      %vm506 = vcmask 64512
      %507 = vst.msk [vmem:[#allocation2] sm:$0xff] %vm506, %v380
      %508 = vst.msk [vmem:[#allocation2 + $0x8] sm:$0xff] %vm506, %v383
      %509 = vst.msk [vmem:[#allocation2 + $0x10] sm:$0xff] %vm506, %v388
      %510 = vst.msk [vmem:[#allocation2 + $0x18] sm:$0xff] %vm506, %v391
      %511 = vst.msk [vmem:[#allocation2 + $0x20] sm:$0xff] %vm506, %v396
      %512 = vst.msk [vmem:[#allocation2 + $0x28] sm:$0xff] %vm506, %v399
      %513 = vst.msk [vmem:[#allocation2 + $0x30] sm:$0xff] %vm506, %v404
      %514 = vst.msk [vmem:[#allocation2 + $0x38] sm:$0xff] %vm506, %v407
      %515 = vst.msk [vmem:[#allocation2 + $0x40] sm:$0xff] %vm506, %v412
      %516 = vst.msk [vmem:[#allocation2 + $0x48] sm:$0xff] %vm506, %v415
      %517 = vst.msk [vmem:[#allocation2 + $0x50] sm:$0xff] %vm506, %v420
      %518 = vst.msk [vmem:[#allocation2 + $0x58] sm:$0xff] %vm506, %v423
      %519 = vst.msk [vmem:[#allocation2 + $0x60] sm:$0xff] %vm506, %v428
      %520 = vst.msk [vmem:[#allocation2 + $0x68] sm:$0xff] %vm506, %v431
      %521 = vst.msk [vmem:[#allocation2 + $0x70] sm:$0xff] %vm506, %v436
      %522 = vst.msk [vmem:[#allocation2 + $0x78] sm:$0xff] %vm506, %v439
      %523 = vst.msk [vmem:[#allocation2 + $0x80] sm:$0xff] %vm506, %v444
      %524 = vst.msk [vmem:[#allocation2 + $0x88] sm:$0xff] %vm506, %v447
      %525 = vst.msk [vmem:[#allocation2 + $0x90] sm:$0xff] %vm506, %v452
      %526 = vst.msk [vmem:[#allocation2 + $0x98] sm:$0xff] %vm506, %v455
      %527 = vst.msk [vmem:[#allocation2 + $0xa0] sm:$0xff] %vm506, %v460
      %528 = vst.msk [vmem:[#allocation2 + $0xa8] sm:$0xff] %vm506, %v463
      %529 = vst.msk [vmem:[#allocation2 + $0xb0] sm:$0xff] %vm506, %v468
      %530 = vst.msk [vmem:[#allocation2 + $0xb8] sm:$0xff] %vm506, %v471
      %531 = vst.msk [vmem:[#allocation2 + $0xc0] sm:$0xff] %vm506, %v476
      %532 = vst.msk [vmem:[#allocation2 + $0xc8] sm:$0xff] %vm506, %v479
      %533 = vst.msk [vmem:[#allocation2 + $0xd0] sm:$0xff] %vm506, %v484
      %534 = vst.msk [vmem:[#allocation2 + $0xd8] sm:$0xff] %vm506, %v487
      %535 = vst.msk [vmem:[#allocation2 + $0xe0] sm:$0xff] %vm506, %v492
      %536 = vst.msk [vmem:[#allocation2 + $0xe8] sm:$0xff] %vm506, %v495
      %537 = vst.msk [vmem:[#allocation2 + $0xf0] sm:$0xff] %vm506, %v500
      %538 = vst.msk [vmem:[#allocation2 + $0xf8] sm:$0xff] %vm506, %v503
      %s539 = scalar_lea.vmem %s166, 8
      %v540 = vld [vmem:[%s539] sm:$0xf]
      %v541 = vld [vmem:[%s539 + $0x4] sm:$0xf]
      %v542 = vld [vmem:[%s539 + $0x8] sm:$0xf]
      %v543 = vld [vmem:[%s539 + $0xc] sm:$0xf]
      %v544 = vld [vmem:[%s539 + $0x10] sm:$0xf]
      %v545 = vld [vmem:[%s539 + $0x14] sm:$0xf]
      %v546 = vld [vmem:[%s539 + $0x18] sm:$0xf]
      %v547 = vld [vmem:[%s539 + $0x1c] sm:$0xf]
      %v548 = vld [vmem:[%s539 + $0x20] sm:$0xf]
      %v549 = vld [vmem:[%s539 + $0x24] sm:$0xf]
      %v550 = vld [vmem:[%s539 + $0x28] sm:$0xf]
      %v551 = vld [vmem:[%s539 + $0x2c] sm:$0xf]
      %v552 = vld [vmem:[%s539 + $0x30] sm:$0xf]
      %v553 = vld [vmem:[%s539 + $0x34] sm:$0xf]
      %v554 = vld [vmem:[%s539 + $0x38] sm:$0xf]
      %v555 = vld [vmem:[%s539 + $0x3c] sm:$0xf]
      %v556 = vld [vmem:[%s539 + $0x40] sm:$0xf]
      %v557 = vld [vmem:[%s539 + $0x44] sm:$0xf]
      %v558 = vld [vmem:[%s539 + $0x48] sm:$0xf]
      %v559 = vld [vmem:[%s539 + $0x4c] sm:$0xf]
      %v560 = vld [vmem:[%s539 + $0x50] sm:$0xf]
      %v561 = vld [vmem:[%s539 + $0x54] sm:$0xf]
      %v562 = vld [vmem:[%s539 + $0x58] sm:$0xf]
      %v563 = vld [vmem:[%s539 + $0x5c] sm:$0xf]
      %v564 = vld [vmem:[%s539 + $0x60] sm:$0xf]
      %v565 = vld [vmem:[%s539 + $0x64] sm:$0xf]
      %v566 = vld [vmem:[%s539 + $0x68] sm:$0xf]
      %v567 = vld [vmem:[%s539 + $0x6c] sm:$0xf]
      %v568 = vld [vmem:[%s539 + $0x70] sm:$0xf]
      %v569 = vld [vmem:[%s539 + $0x74] sm:$0xf]
      %v570 = vld [vmem:[%s539 + $0x78] sm:$0xf]
      %v571 = vld [vmem:[%s539 + $0x7c] sm:$0xf]
      %s572 = scalar_lea.vmem %s2, 8
      %v573 = vld [vmem:[%s572] sm:$0xf]
      %v574 = vld [vmem:[%s572 + $0x4] sm:$0x3]
      %v607 = vunpack.c.l.b16 %v540
      %v608 = vunpack.c.l.b16 %v541
      %v609 = vunpack.c.l.b16 %v542
      %v610 = vunpack.c.l.b16 %v543
      %v611 = vunpack.c.l.b16 %v544
      %v612 = vunpack.c.l.b16 %v545
      %v613 = vunpack.c.l.b16 %v546
      %v614 = vunpack.c.l.b16 %v547
      %v615 = vunpack.c.l.b16 %v548
      %v616 = vunpack.c.l.b16 %v549
      %v617 = vunpack.c.l.b16 %v550
      %v618 = vunpack.c.l.b16 %v551
      %v619 = vunpack.c.l.b16 %v552
      %v620 = vunpack.c.l.b16 %v553
      %v621 = vunpack.c.l.b16 %v554
      %v622 = vunpack.c.l.b16 %v555
      %v623 = vunpack.c.l.b16 %v556
      %v624 = vunpack.c.l.b16 %v557
      %v625 = vunpack.c.l.b16 %v558
      %v626 = vunpack.c.l.b16 %v559
      %v627 = vunpack.c.l.b16 %v560
      %v628 = vunpack.c.l.b16 %v561
      %v629 = vunpack.c.l.b16 %v562
      %v630 = vunpack.c.l.b16 %v563
      %v631 = vunpack.c.l.b16 %v564
      %v632 = vunpack.c.l.b16 %v565
      %v633 = vunpack.c.l.b16 %v566
      %v634 = vunpack.c.l.b16 %v567
      %v635 = vunpack.c.l.b16 %v568
      %v636 = vunpack.c.l.b16 %v569
      %v637 = vunpack.c.l.b16 %v570
      %v638 = vunpack.c.l.b16 %v571
      %v639 = vpack.c.b16 %v608, %v607
      %v640 = vpack.c.b16 %v610, %v609
      %v641 = vpack.c.b16 %v612, %v611
      %v642 = vpack.c.b16 %v614, %v613
      %v643 = vpack.c.b16 %v616, %v615
      %v644 = vpack.c.b16 %v618, %v617
      %v645 = vpack.c.b16 %v620, %v619
      %v646 = vpack.c.b16 %v622, %v621
      %v647 = vpack.c.b16 %v624, %v623
      %v648 = vpack.c.b16 %v626, %v625
      %v649 = vpack.c.b16 %v628, %v627
      %v650 = vpack.c.b16 %v630, %v629
      %v651 = vpack.c.b16 %v632, %v631
      %v652 = vpack.c.b16 %v634, %v633
      %v653 = vpack.c.b16 %v636, %v635
      %v654 = vpack.c.b16 %v638, %v637
      %v657 = vunpack.c.l.b16 %v573
      %v658 = vunpack.c.l.b16 %v574
      %v659 = vpack.c.b16 %v658, %v657
      %v661 = vsel %vm292, %v639, 0
      %v664 = vsel %vm292, %v640, 0
      %v667 = vsel %vm292, %v641, 0
      %v670 = vsel %vm292, %v642, 0
      %v673 = vsel %vm292, %v643, 0
      %v676 = vsel %vm292, %v644, 0
      %v679 = vsel %vm292, %v645, 0
      %v682 = vsel %vm292, %v646, 0
      %v685 = vsel %vm292, %v647, 0
      %v688 = vsel %vm292, %v648, 0
      %v691 = vsel %vm292, %v649, 0
      %v694 = vsel %vm292, %v650, 0
      %v697 = vsel %vm292, %v651, 0
      %v700 = vsel %vm292, %v652, 0
      %v703 = vsel %vm292, %v653, 0
      %v706 = vsel %vm292, %v654, 0
      %v709 = vsel %vm341, %v659, 0
      %711 = vmatprep.subr.bf16.mxu0 0
      %712 = vmatpush1.bf16.msra.mxu0 0
      %713 = vmatprep.subr.bf16.mxu0 0
      %714 = vmatpush1.bf16.msra.mxu0 0
      %715 = vmatprep.subr.bf16.mxu0 0
      %716 = vmatpush1.bf16.msra.mxu0 0
      %717 = vmatprep.subr.bf16.mxu0 0
      %718 = vmatpush1.bf16.msra.mxu0 0
      %719 = vmatprep.subr.bf16.mxu0 0
      %720 = vmatpush1.bf16.msra.mxu0 0
      %721 = vmatprep.subr.bf16.mxu0 0
      %722 = vmatpush1.bf16.msra.mxu0 0
      %723 = vmatprep.subr.bf16.mxu0 0
      %724 = vmatpush1.bf16.msra.mxu0 0
      %725 = vmatprep.subr.bf16.mxu0 0
      %726 = vmatpush1.bf16.msra.mxu0 %v709
      %727 = vmatprep.subr.bf16.mxu0 0
      %728 = vmatpush2.bf16.msra.mxu0 0
      %729 = vmatprep.subr.bf16.mxu0 0
      %730 = vmatpush2.bf16.msra.mxu0 0
      %731 = vmatprep.subr.bf16.mxu0 0
      %732 = vmatpush2.bf16.msra.mxu0 0
      %733 = vmatprep.subr.bf16.mxu0 0
      %734 = vmatpush2.bf16.msra.mxu0 0
      %735 = vmatprep.subr.bf16.mxu0 0
      %736 = vmatpush2.bf16.msra.mxu0 0
      %737 = vmatprep.subr.bf16.mxu0 0
      %738 = vmatpush2.bf16.msra.mxu0 0
      %739 = vmatprep.subr.bf16.mxu0 0
      %740 = vmatpush2.bf16.msra.mxu0 0
      %741 = vmatprep.subr.bf16.mxu0 0
      %742 = vmatpush2.bf16.msra.mxu0 0
      %743 = vmatprep.mubr.bf16.mxu0 0
      %744 = vmatmul.mubr.bf16.gmra.mxu0 %v661
      %v745 = vpop.f32.mrf.mxu0
      %v746 = vadd.f32 0.0, %v745
      %v747 = vpop.f32.mrf.mxu0
      %v748 = vpop.f32.mrf.mxu0
      %v749 = vadd.f32 0.0, %v748
      %v750 = vpop.f32.mrf.mxu0
      %751 = vmatprep.mubr.bf16.mxu0 0
      %752 = vmatmul.mubr.bf16.gmra.mxu0 %v664
      %v753 = vpop.f32.mrf.mxu0
      %v754 = vadd.f32 0.0, %v753
      %v755 = vpop.f32.mrf.mxu0
      %v756 = vpop.f32.mrf.mxu0
      %v757 = vadd.f32 0.0, %v756
      %v758 = vpop.f32.mrf.mxu0
      %759 = vmatprep.mubr.bf16.mxu0 0
      %760 = vmatmul.mubr.bf16.gmra.mxu0 %v667
      %v761 = vpop.f32.mrf.mxu0
      %v762 = vadd.f32 0.0, %v761
      %v763 = vpop.f32.mrf.mxu0
      %v764 = vpop.f32.mrf.mxu0
      %v765 = vadd.f32 0.0, %v764
      %v766 = vpop.f32.mrf.mxu0
      %767 = vmatprep.mubr.bf16.mxu0 0
      %768 = vmatmul.mubr.bf16.gmra.mxu0 %v670
      %v769 = vpop.f32.mrf.mxu0
      %v770 = vadd.f32 0.0, %v769
      %v771 = vpop.f32.mrf.mxu0
      %v772 = vpop.f32.mrf.mxu0
      %v773 = vadd.f32 0.0, %v772
      %v774 = vpop.f32.mrf.mxu0
      %775 = vmatprep.mubr.bf16.mxu0 0
      %776 = vmatmul.mubr.bf16.gmra.mxu0 %v673
      %v777 = vpop.f32.mrf.mxu0
      %v778 = vadd.f32 0.0, %v777
      %v779 = vpop.f32.mrf.mxu0
      %v780 = vpop.f32.mrf.mxu0
      %v781 = vadd.f32 0.0, %v780
      %v782 = vpop.f32.mrf.mxu0
      %783 = vmatprep.mubr.bf16.mxu0 0
      %784 = vmatmul.mubr.bf16.gmra.mxu0 %v676
      %v785 = vpop.f32.mrf.mxu0
      %v786 = vadd.f32 0.0, %v785
      %v787 = vpop.f32.mrf.mxu0
      %v788 = vpop.f32.mrf.mxu0
      %v789 = vadd.f32 0.0, %v788
      %v790 = vpop.f32.mrf.mxu0
      %791 = vmatprep.mubr.bf16.mxu0 0
      %792 = vmatmul.mubr.bf16.gmra.mxu0 %v679
      %v793 = vpop.f32.mrf.mxu0
      %v794 = vadd.f32 0.0, %v793
      %v795 = vpop.f32.mrf.mxu0
      %v796 = vpop.f32.mrf.mxu0
      %v797 = vadd.f32 0.0, %v796
      %v798 = vpop.f32.mrf.mxu0
      %799 = vmatprep.mubr.bf16.mxu0 0
      %800 = vmatmul.mubr.bf16.gmra.mxu0 %v682
      %v801 = vpop.f32.mrf.mxu0
      %v802 = vadd.f32 0.0, %v801
      %v803 = vpop.f32.mrf.mxu0
      %v804 = vpop.f32.mrf.mxu0
      %v805 = vadd.f32 0.0, %v804
      %v806 = vpop.f32.mrf.mxu0
      %807 = vmatprep.mubr.bf16.mxu0 0
      %808 = vmatmul.mubr.bf16.gmra.mxu0 %v685
      %v809 = vpop.f32.mrf.mxu0
      %v810 = vadd.f32 0.0, %v809
      %v811 = vpop.f32.mrf.mxu0
      %v812 = vpop.f32.mrf.mxu0
      %v813 = vadd.f32 0.0, %v812
      %v814 = vpop.f32.mrf.mxu0
      %815 = vmatprep.mubr.bf16.mxu0 0
      %816 = vmatmul.mubr.bf16.gmra.mxu0 %v688
      %v817 = vpop.f32.mrf.mxu0
      %v818 = vadd.f32 0.0, %v817
      %v819 = vpop.f32.mrf.mxu0
      %v820 = vpop.f32.mrf.mxu0
      %v821 = vadd.f32 0.0, %v820
      %v822 = vpop.f32.mrf.mxu0
      %823 = vmatprep.mubr.bf16.mxu0 0
      %824 = vmatmul.mubr.bf16.gmra.mxu0 %v691
      %v825 = vpop.f32.mrf.mxu0
      %v826 = vadd.f32 0.0, %v825
      %v827 = vpop.f32.mrf.mxu0
      %v828 = vpop.f32.mrf.mxu0
      %v829 = vadd.f32 0.0, %v828
      %v830 = vpop.f32.mrf.mxu0
      %831 = vmatprep.mubr.bf16.mxu0 0
      %832 = vmatmul.mubr.bf16.gmra.mxu0 %v694
      %v833 = vpop.f32.mrf.mxu0
      %v834 = vadd.f32 0.0, %v833
      %v835 = vpop.f32.mrf.mxu0
      %v836 = vpop.f32.mrf.mxu0
      %v837 = vadd.f32 0.0, %v836
      %v838 = vpop.f32.mrf.mxu0
      %839 = vmatprep.mubr.bf16.mxu0 0
      %840 = vmatmul.mubr.bf16.gmra.mxu0 %v697
      %v841 = vpop.f32.mrf.mxu0
      %v842 = vadd.f32 0.0, %v841
      %v843 = vpop.f32.mrf.mxu0
      %v844 = vpop.f32.mrf.mxu0
      %v845 = vadd.f32 0.0, %v844
      %v846 = vpop.f32.mrf.mxu0
      %847 = vmatprep.mubr.bf16.mxu0 0
      %848 = vmatmul.mubr.bf16.gmra.mxu0 %v700
      %v849 = vpop.f32.mrf.mxu0
      %v850 = vadd.f32 0.0, %v849
      %v851 = vpop.f32.mrf.mxu0
      %v852 = vpop.f32.mrf.mxu0
      %v853 = vadd.f32 0.0, %v852
      %v854 = vpop.f32.mrf.mxu0
      %855 = vmatprep.mubr.bf16.mxu0 0
      %856 = vmatmul.mubr.bf16.gmra.mxu0 %v703
      %v857 = vpop.f32.mrf.mxu0
      %v858 = vadd.f32 0.0, %v857
      %v859 = vpop.f32.mrf.mxu0
      %v860 = vpop.f32.mrf.mxu0
      %v861 = vadd.f32 0.0, %v860
      %v862 = vpop.f32.mrf.mxu0
      %863 = vmatprep.mubr.bf16.mxu0 0
      %864 = vmatmul.mubr.bf16.gmra.mxu0 %v706
      %v865 = vpop.f32.mrf.mxu0
      %v866 = vadd.f32 0.0, %v865
      %v867 = vpop.f32.mrf.mxu0
      %v868 = vpop.f32.mrf.mxu0
      %v869 = vadd.f32 0.0, %v868
      %v870 = vpop.f32.mrf.mxu0
      %871 = vdwg.mxu0
      %v872 = vld [vmem:[#allocation2] sm:$0xff]
      %v873 = vld [vmem:[#allocation2 + $0x8] sm:$0xff]
      %v874 = vld [vmem:[#allocation2 + $0x10] sm:$0xff]
      %v875 = vld [vmem:[#allocation2 + $0x18] sm:$0xff]
      %v876 = vld [vmem:[#allocation2 + $0x20] sm:$0xff]
      %v877 = vld [vmem:[#allocation2 + $0x28] sm:$0xff]
      %v878 = vld [vmem:[#allocation2 + $0x30] sm:$0xff]
      %v879 = vld [vmem:[#allocation2 + $0x38] sm:$0xff]
      %v880 = vld [vmem:[#allocation2 + $0x40] sm:$0xff]
      %v881 = vld [vmem:[#allocation2 + $0x48] sm:$0xff]
      %v882 = vld [vmem:[#allocation2 + $0x50] sm:$0xff]
      %v883 = vld [vmem:[#allocation2 + $0x58] sm:$0xff]
      %v884 = vld [vmem:[#allocation2 + $0x60] sm:$0xff]
      %v885 = vld [vmem:[#allocation2 + $0x68] sm:$0xff]
      %v886 = vld [vmem:[#allocation2 + $0x70] sm:$0xff]
      %v887 = vld [vmem:[#allocation2 + $0x78] sm:$0xff]
      %v888 = vld [vmem:[#allocation2 + $0x80] sm:$0xff]
      %v889 = vld [vmem:[#allocation2 + $0x88] sm:$0xff]
      %v890 = vld [vmem:[#allocation2 + $0x90] sm:$0xff]
      %v891 = vld [vmem:[#allocation2 + $0x98] sm:$0xff]
      %v892 = vld [vmem:[#allocation2 + $0xa0] sm:$0xff]
      %v893 = vld [vmem:[#allocation2 + $0xa8] sm:$0xff]
      %v894 = vld [vmem:[#allocation2 + $0xb0] sm:$0xff]
      %v895 = vld [vmem:[#allocation2 + $0xb8] sm:$0xff]
      %v896 = vld [vmem:[#allocation2 + $0xc0] sm:$0xff]
      %v897 = vld [vmem:[#allocation2 + $0xc8] sm:$0xff]
      %v898 = vld [vmem:[#allocation2 + $0xd0] sm:$0xff]
      %v899 = vld [vmem:[#allocation2 + $0xd8] sm:$0xff]
      %v900 = vld [vmem:[#allocation2 + $0xe0] sm:$0xff]
      %v901 = vld [vmem:[#allocation2 + $0xe8] sm:$0xff]
      %v902 = vld [vmem:[#allocation2 + $0xf0] sm:$0xff]
      %v903 = vld [vmem:[#allocation2 + $0xf8] sm:$0xff]
      %v904 = vadd.f32 %v872, %v746
      %v905 = vadd.f32 %v873, %v749
      %v906 = vadd.f32 %v874, %v754
      %v907 = vadd.f32 %v875, %v757
      %v908 = vadd.f32 %v876, %v762
      %v909 = vadd.f32 %v877, %v765
      %v910 = vadd.f32 %v878, %v770
      %v911 = vadd.f32 %v879, %v773
      %v912 = vadd.f32 %v880, %v778
      %v913 = vadd.f32 %v881, %v781
      %v914 = vadd.f32 %v882, %v786
      %v915 = vadd.f32 %v883, %v789
      %v916 = vadd.f32 %v884, %v794
      %v917 = vadd.f32 %v885, %v797
      %v918 = vadd.f32 %v886, %v802
      %v919 = vadd.f32 %v887, %v805
      %v920 = vadd.f32 %v888, %v810
      %v921 = vadd.f32 %v889, %v813
      %v922 = vadd.f32 %v890, %v818
      %v923 = vadd.f32 %v891, %v821
      %v924 = vadd.f32 %v892, %v826
      %v925 = vadd.f32 %v893, %v829
      %v926 = vadd.f32 %v894, %v834
      %v927 = vadd.f32 %v895, %v837
      %v928 = vadd.f32 %v896, %v842
      %v929 = vadd.f32 %v897, %v845
      %v930 = vadd.f32 %v898, %v850
      %v931 = vadd.f32 %v899, %v853
      %v932 = vadd.f32 %v900, %v858
      %v933 = vadd.f32 %v901, %v861
      %v934 = vadd.f32 %v902, %v866
      %v935 = vadd.f32 %v903, %v869
      %936 = vst.msk [vmem:[#allocation2] sm:$0xff] %vm506, %v904
      %937 = vst.msk [vmem:[#allocation2 + $0x8] sm:$0xff] %vm506, %v905
      %938 = vst.msk [vmem:[#allocation2 + $0x10] sm:$0xff] %vm506, %v906
      %939 = vst.msk [vmem:[#allocation2 + $0x18] sm:$0xff] %vm506, %v907
      %940 = vst.msk [vmem:[#allocation2 + $0x20] sm:$0xff] %vm506, %v908
      %941 = vst.msk [vmem:[#allocation2 + $0x28] sm:$0xff] %vm506, %v909
      %942 = vst.msk [vmem:[#allocation2 + $0x30] sm:$0xff] %vm506, %v910
      %943 = vst.msk [vmem:[#allocation2 + $0x38] sm:$0xff] %vm506, %v911
      %944 = vst.msk [vmem:[#allocation2 + $0x40] sm:$0xff] %vm506, %v912
      %945 = vst.msk [vmem:[#allocation2 + $0x48] sm:$0xff] %vm506, %v913
      %946 = vst.msk [vmem:[#allocation2 + $0x50] sm:$0xff] %vm506, %v914
      %947 = vst.msk [vmem:[#allocation2 + $0x58] sm:$0xff] %vm506, %v915
      %948 = vst.msk [vmem:[#allocation2 + $0x60] sm:$0xff] %vm506, %v916
      %949 = vst.msk [vmem:[#allocation2 + $0x68] sm:$0xff] %vm506, %v917
      %950 = vst.msk [vmem:[#allocation2 + $0x70] sm:$0xff] %vm506, %v918
      %951 = vst.msk [vmem:[#allocation2 + $0x78] sm:$0xff] %vm506, %v919
      %952 = vst.msk [vmem:[#allocation2 + $0x80] sm:$0xff] %vm506, %v920
      %953 = vst.msk [vmem:[#allocation2 + $0x88] sm:$0xff] %vm506, %v921
      %954 = vst.msk [vmem:[#allocation2 + $0x90] sm:$0xff] %vm506, %v922
      %955 = vst.msk [vmem:[#allocation2 + $0x98] sm:$0xff] %vm506, %v923
      %956 = vst.msk [vmem:[#allocation2 + $0xa0] sm:$0xff] %vm506, %v924
      %957 = vst.msk [vmem:[#allocation2 + $0xa8] sm:$0xff] %vm506, %v925
      %958 = vst.msk [vmem:[#allocation2 + $0xb0] sm:$0xff] %vm506, %v926
      %959 = vst.msk [vmem:[#allocation2 + $0xb8] sm:$0xff] %vm506, %v927
      %960 = vst.msk [vmem:[#allocation2 + $0xc0] sm:$0xff] %vm506, %v928
      %961 = vst.msk [vmem:[#allocation2 + $0xc8] sm:$0xff] %vm506, %v929
      %962 = vst.msk [vmem:[#allocation2 + $0xd0] sm:$0xff] %vm506, %v930
      %963 = vst.msk [vmem:[#allocation2 + $0xd8] sm:$0xff] %vm506, %v931
      %964 = vst.msk [vmem:[#allocation2 + $0xe0] sm:$0xff] %vm506, %v932
      %965 = vst.msk [vmem:[#allocation2 + $0xe8] sm:$0xff] %vm506, %v933
      %966 = vst.msk [vmem:[#allocation2 + $0xf0] sm:$0xff] %vm506, %v934
      %967 = vst.msk [vmem:[#allocation2 + $0xf8] sm:$0xff] %vm506, %v935
      %s968 = scalar_lea.vmem %s166, 16
      %v969 = vld [vmem:[%s968] sm:$0xf]
      %v970 = vld [vmem:[%s968 + $0x4] sm:$0xf]
      %v971 = vld [vmem:[%s968 + $0x8] sm:$0xf]
      %v972 = vld [vmem:[%s968 + $0xc] sm:$0xf]
      %v973 = vld [vmem:[%s968 + $0x10] sm:$0xf]
      %v974 = vld [vmem:[%s968 + $0x14] sm:$0xf]
      %v975 = vld [vmem:[%s968 + $0x18] sm:$0xf]
      %v976 = vld [vmem:[%s968 + $0x1c] sm:$0xf]
      %v977 = vld [vmem:[%s968 + $0x20] sm:$0xf]
      %v978 = vld [vmem:[%s968 + $0x24] sm:$0xf]
      %v979 = vld [vmem:[%s968 + $0x28] sm:$0xf]
      %v980 = vld [vmem:[%s968 + $0x2c] sm:$0xf]
      %v981 = vld [vmem:[%s968 + $0x30] sm:$0xf]
      %v982 = vld [vmem:[%s968 + $0x34] sm:$0xf]
      %v983 = vld [vmem:[%s968 + $0x38] sm:$0xf]
      %v984 = vld [vmem:[%s968 + $0x3c] sm:$0xf]
      %v985 = vld [vmem:[%s968 + $0x40] sm:$0xf]
      %v986 = vld [vmem:[%s968 + $0x44] sm:$0xf]
      %v987 = vld [vmem:[%s968 + $0x48] sm:$0xf]
      %v988 = vld [vmem:[%s968 + $0x4c] sm:$0xf]
      %v989 = vld [vmem:[%s968 + $0x50] sm:$0xf]
      %v990 = vld [vmem:[%s968 + $0x54] sm:$0xf]
      %v991 = vld [vmem:[%s968 + $0x58] sm:$0xf]
      %v992 = vld [vmem:[%s968 + $0x5c] sm:$0xf]
      %v993 = vld [vmem:[%s968 + $0x60] sm:$0xf]
      %v994 = vld [vmem:[%s968 + $0x64] sm:$0xf]
      %v995 = vld [vmem:[%s968 + $0x68] sm:$0xf]
      %v996 = vld [vmem:[%s968 + $0x6c] sm:$0xf]
      %v997 = vld [vmem:[%s968 + $0x70] sm:$0xf]
      %v998 = vld [vmem:[%s968 + $0x74] sm:$0xf]
      %v999 = vld [vmem:[%s968 + $0x78] sm:$0xf]
      %v1000 = vld [vmem:[%s968 + $0x7c] sm:$0xf]
      %s1001 = scalar_lea.vmem %s2, 16
      %v1002 = vld [vmem:[%s1001] sm:$0xf]
      %v1003 = vld [vmem:[%s1001 + $0x4] sm:$0x3]
      %v1036 = vunpack.c.l.b16 %v969
      %v1037 = vunpack.c.l.b16 %v970
      %v1038 = vunpack.c.l.b16 %v971
      %v1039 = vunpack.c.l.b16 %v972
      %v1040 = vunpack.c.l.b16 %v973
      %v1041 = vunpack.c.l.b16 %v974
      %v1042 = vunpack.c.l.b16 %v975
      %v1043 = vunpack.c.l.b16 %v976
      %v1044 = vunpack.c.l.b16 %v977
      %v1045 = vunpack.c.l.b16 %v978
      %v1046 = vunpack.c.l.b16 %v979
      %v1047 = vunpack.c.l.b16 %v980
      %v1048 = vunpack.c.l.b16 %v981
      %v1049 = vunpack.c.l.b16 %v982
      %v1050 = vunpack.c.l.b16 %v983
      %v1051 = vunpack.c.l.b16 %v984
      %v1052 = vunpack.c.l.b16 %v985
      %v1053 = vunpack.c.l.b16 %v986
      %v1054 = vunpack.c.l.b16 %v987
      %v1055 = vunpack.c.l.b16 %v988
      %v1056 = vunpack.c.l.b16 %v989
      %v1057 = vunpack.c.l.b16 %v990
      %v1058 = vunpack.c.l.b16 %v991
      %v1059 = vunpack.c.l.b16 %v992
      %v1060 = vunpack.c.l.b16 %v993
      %v1061 = vunpack.c.l.b16 %v994
      %v1062 = vunpack.c.l.b16 %v995
      %v1063 = vunpack.c.l.b16 %v996
      %v1064 = vunpack.c.l.b16 %v997
      %v1065 = vunpack.c.l.b16 %v998
      %v1066 = vunpack.c.l.b16 %v999
      %v1067 = vunpack.c.l.b16 %v1000
      %v1068 = vpack.c.b16 %v1037, %v1036
      %v1069 = vpack.c.b16 %v1039, %v1038
      %v1070 = vpack.c.b16 %v1041, %v1040
      %v1071 = vpack.c.b16 %v1043, %v1042
      %v1072 = vpack.c.b16 %v1045, %v1044
      %v1073 = vpack.c.b16 %v1047, %v1046
      %v1074 = vpack.c.b16 %v1049, %v1048
      %v1075 = vpack.c.b16 %v1051, %v1050
      %v1076 = vpack.c.b16 %v1053, %v1052
      %v1077 = vpack.c.b16 %v1055, %v1054
      %v1078 = vpack.c.b16 %v1057, %v1056
      %v1079 = vpack.c.b16 %v1059, %v1058
      %v1080 = vpack.c.b16 %v1061, %v1060
      %v1081 = vpack.c.b16 %v1063, %v1062
      %v1082 = vpack.c.b16 %v1065, %v1064
      %v1083 = vpack.c.b16 %v1067, %v1066
      %v1086 = vunpack.c.l.b16 %v1002
      %v1087 = vunpack.c.l.b16 %v1003
      %v1088 = vpack.c.b16 %v1087, %v1086
      %v1090 = vsel %vm292, %v1068, 0
      %v1093 = vsel %vm292, %v1069, 0
      %v1096 = vsel %vm292, %v1070, 0
      %v1099 = vsel %vm292, %v1071, 0
      %v1102 = vsel %vm292, %v1072, 0
      %v1105 = vsel %vm292, %v1073, 0
      %v1108 = vsel %vm292, %v1074, 0
      %v1111 = vsel %vm292, %v1075, 0
      %v1114 = vsel %vm292, %v1076, 0
      %v1117 = vsel %vm292, %v1077, 0
      %v1120 = vsel %vm292, %v1078, 0
      %v1123 = vsel %vm292, %v1079, 0
      %v1126 = vsel %vm292, %v1080, 0
      %v1129 = vsel %vm292, %v1081, 0
      %v1132 = vsel %vm292, %v1082, 0
      %v1135 = vsel %vm292, %v1083, 0
      %v1138 = vsel %vm341, %v1088, 0
      %1140 = vmatprep.subr.bf16.mxu0 0
      %1141 = vmatpush1.bf16.msra.mxu0 0
      %1142 = vmatprep.subr.bf16.mxu0 0
      %1143 = vmatpush1.bf16.msra.mxu0 0
      %1144 = vmatprep.subr.bf16.mxu0 0
      %1145 = vmatpush1.bf16.msra.mxu0 0
      %1146 = vmatprep.subr.bf16.mxu0 0
      %1147 = vmatpush1.bf16.msra.mxu0 0
      %1148 = vmatprep.subr.bf16.mxu0 0
      %1149 = vmatpush1.bf16.msra.mxu0 0
      %1150 = vmatprep.subr.bf16.mxu0 0
      %1151 = vmatpush1.bf16.msra.mxu0 0
      %1152 = vmatprep.subr.bf16.mxu0 0
      %1153 = vmatpush1.bf16.msra.mxu0 0
      %1154 = vmatprep.subr.bf16.mxu0 0
      %1155 = vmatpush1.bf16.msra.mxu0 %v1138
      %1156 = vmatprep.subr.bf16.mxu0 0
      %1157 = vmatpush2.bf16.msra.mxu0 0
      %1158 = vmatprep.subr.bf16.mxu0 0
      %1159 = vmatpush2.bf16.msra.mxu0 0
      %1160 = vmatprep.subr.bf16.mxu0 0
      %1161 = vmatpush2.bf16.msra.mxu0 0
      %1162 = vmatprep.subr.bf16.mxu0 0
      %1163 = vmatpush2.bf16.msra.mxu0 0
      %1164 = vmatprep.subr.bf16.mxu0 0
      %1165 = vmatpush2.bf16.msra.mxu0 0
      %1166 = vmatprep.subr.bf16.mxu0 0
      %1167 = vmatpush2.bf16.msra.mxu0 0
      %1168 = vmatprep.subr.bf16.mxu0 0
      %1169 = vmatpush2.bf16.msra.mxu0 0
      %1170 = vmatprep.subr.bf16.mxu0 0
      %1171 = vmatpush2.bf16.msra.mxu0 0
      %1172 = vmatprep.mubr.bf16.mxu0 0
      %1173 = vmatmul.mubr.bf16.gmra.mxu0 %v1090
      %v1174 = vpop.f32.mrf.mxu0
      %v1175 = vadd.f32 0.0, %v1174
      %v1176 = vpop.f32.mrf.mxu0
      %v1177 = vpop.f32.mrf.mxu0
      %v1178 = vadd.f32 0.0, %v1177
      %v1179 = vpop.f32.mrf.mxu0
      %1180 = vmatprep.mubr.bf16.mxu0 0
      %1181 = vmatmul.mubr.bf16.gmra.mxu0 %v1093
      %v1182 = vpop.f32.mrf.mxu0
      %v1183 = vadd.f32 0.0, %v1182
      %v1184 = vpop.f32.mrf.mxu0
      %v1185 = vpop.f32.mrf.mxu0
      %v1186 = vadd.f32 0.0, %v1185
      %v1187 = vpop.f32.mrf.mxu0
      %1188 = vmatprep.mubr.bf16.mxu0 0
      %1189 = vmatmul.mubr.bf16.gmra.mxu0 %v1096
      %v1190 = vpop.f32.mrf.mxu0
      %v1191 = vadd.f32 0.0, %v1190
      %v1192 = vpop.f32.mrf.mxu0
      %v1193 = vpop.f32.mrf.mxu0
      %v1194 = vadd.f32 0.0, %v1193
      %v1195 = vpop.f32.mrf.mxu0
      %1196 = vmatprep.mubr.bf16.mxu0 0
      %1197 = vmatmul.mubr.bf16.gmra.mxu0 %v1099
      %v1198 = vpop.f32.mrf.mxu0
      %v1199 = vadd.f32 0.0, %v1198
      %v1200 = vpop.f32.mrf.mxu0
      %v1201 = vpop.f32.mrf.mxu0
      %v1202 = vadd.f32 0.0, %v1201
      %v1203 = vpop.f32.mrf.mxu0
      %1204 = vmatprep.mubr.bf16.mxu0 0
      %1205 = vmatmul.mubr.bf16.gmra.mxu0 %v1102
      %v1206 = vpop.f32.mrf.mxu0
      %v1207 = vadd.f32 0.0, %v1206
      %v1208 = vpop.f32.mrf.mxu0
      %v1209 = vpop.f32.mrf.mxu0
      %v1210 = vadd.f32 0.0, %v1209
      %v1211 = vpop.f32.mrf.mxu0
      %1212 = vmatprep.mubr.bf16.mxu0 0
      %1213 = vmatmul.mubr.bf16.gmra.mxu0 %v1105
      %v1214 = vpop.f32.mrf.mxu0
      %v1215 = vadd.f32 0.0, %v1214
      %v1216 = vpop.f32.mrf.mxu0
      %v1217 = vpop.f32.mrf.mxu0
      %v1218 = vadd.f32 0.0, %v1217
      %v1219 = vpop.f32.mrf.mxu0
      %1220 = vmatprep.mubr.bf16.mxu0 0
      %1221 = vmatmul.mubr.bf16.gmra.mxu0 %v1108
      %v1222 = vpop.f32.mrf.mxu0
      %v1223 = vadd.f32 0.0, %v1222
      %v1224 = vpop.f32.mrf.mxu0
      %v1225 = vpop.f32.mrf.mxu0
      %v1226 = vadd.f32 0.0, %v1225
      %v1227 = vpop.f32.mrf.mxu0
      %1228 = vmatprep.mubr.bf16.mxu0 0
      %1229 = vmatmul.mubr.bf16.gmra.mxu0 %v1111
      %v1230 = vpop.f32.mrf.mxu0
      %v1231 = vadd.f32 0.0, %v1230
      %v1232 = vpop.f32.mrf.mxu0
      %v1233 = vpop.f32.mrf.mxu0
      %v1234 = vadd.f32 0.0, %v1233
      %v1235 = vpop.f32.mrf.mxu0
      %1236 = vmatprep.mubr.bf16.mxu0 0
      %1237 = vmatmul.mubr.bf16.gmra.mxu0 %v1114
      %v1238 = vpop.f32.mrf.mxu0
      %v1239 = vadd.f32 0.0, %v1238
      %v1240 = vpop.f32.mrf.mxu0
      %v1241 = vpop.f32.mrf.mxu0
      %v1242 = vadd.f32 0.0, %v1241
      %v1243 = vpop.f32.mrf.mxu0
      %1244 = vmatprep.mubr.bf16.mxu0 0
      %1245 = vmatmul.mubr.bf16.gmra.mxu0 %v1117
      %v1246 = vpop.f32.mrf.mxu0
      %v1247 = vadd.f32 0.0, %v1246
      %v1248 = vpop.f32.mrf.mxu0
      %v1249 = vpop.f32.mrf.mxu0
      %v1250 = vadd.f32 0.0, %v1249
      %v1251 = vpop.f32.mrf.mxu0
      %1252 = vmatprep.mubr.bf16.mxu0 0
      %1253 = vmatmul.mubr.bf16.gmra.mxu0 %v1120
      %v1254 = vpop.f32.mrf.mxu0
      %v1255 = vadd.f32 0.0, %v1254
      %v1256 = vpop.f32.mrf.mxu0
      %v1257 = vpop.f32.mrf.mxu0
      %v1258 = vadd.f32 0.0, %v1257
      %v1259 = vpop.f32.mrf.mxu0
      %1260 = vmatprep.mubr.bf16.mxu0 0
      %1261 = vmatmul.mubr.bf16.gmra.mxu0 %v1123
      %v1262 = vpop.f32.mrf.mxu0
      %v1263 = vadd.f32 0.0, %v1262
      %v1264 = vpop.f32.mrf.mxu0
      %v1265 = vpop.f32.mrf.mxu0
      %v1266 = vadd.f32 0.0, %v1265
      %v1267 = vpop.f32.mrf.mxu0
      %1268 = vmatprep.mubr.bf16.mxu0 0
      %1269 = vmatmul.mubr.bf16.gmra.mxu0 %v1126
      %v1270 = vpop.f32.mrf.mxu0
      %v1271 = vadd.f32 0.0, %v1270
      %v1272 = vpop.f32.mrf.mxu0
      %v1273 = vpop.f32.mrf.mxu0
      %v1274 = vadd.f32 0.0, %v1273
      %v1275 = vpop.f32.mrf.mxu0
      %1276 = vmatprep.mubr.bf16.mxu0 0
      %1277 = vmatmul.mubr.bf16.gmra.mxu0 %v1129
      %v1278 = vpop.f32.mrf.mxu0
      %v1279 = vadd.f32 0.0, %v1278
      %v1280 = vpop.f32.mrf.mxu0
      %v1281 = vpop.f32.mrf.mxu0
      %v1282 = vadd.f32 0.0, %v1281
      %v1283 = vpop.f32.mrf.mxu0
      %1284 = vmatprep.mubr.bf16.mxu0 0
      %1285 = vmatmul.mubr.bf16.gmra.mxu0 %v1132
      %v1286 = vpop.f32.mrf.mxu0
      %v1287 = vadd.f32 0.0, %v1286
      %v1288 = vpop.f32.mrf.mxu0
      %v1289 = vpop.f32.mrf.mxu0
      %v1290 = vadd.f32 0.0, %v1289
      %v1291 = vpop.f32.mrf.mxu0
      %1292 = vmatprep.mubr.bf16.mxu0 0
      %1293 = vmatmul.mubr.bf16.gmra.mxu0 %v1135
      %v1294 = vpop.f32.mrf.mxu0
      %v1295 = vadd.f32 0.0, %v1294
      %v1296 = vpop.f32.mrf.mxu0
      %v1297 = vpop.f32.mrf.mxu0
      %v1298 = vadd.f32 0.0, %v1297
      %v1299 = vpop.f32.mrf.mxu0
      %1300 = vdwg.mxu0
      %v1301 = vld [vmem:[#allocation2] sm:$0xff]
      %v1302 = vld [vmem:[#allocation2 + $0x8] sm:$0xff]
      %v1303 = vld [vmem:[#allocation2 + $0x10] sm:$0xff]
      %v1304 = vld [vmem:[#allocation2 + $0x18] sm:$0xff]
      %v1305 = vld [vmem:[#allocation2 + $0x20] sm:$0xff]
      %v1306 = vld [vmem:[#allocation2 + $0x28] sm:$0xff]
      %v1307 = vld [vmem:[#allocation2 + $0x30] sm:$0xff]
      %v1308 = vld [vmem:[#allocation2 + $0x38] sm:$0xff]
      %v1309 = vld [vmem:[#allocation2 + $0x40] sm:$0xff]
      %v1310 = vld [vmem:[#allocation2 + $0x48] sm:$0xff]
      %v1311 = vld [vmem:[#allocation2 + $0x50] sm:$0xff]
      %v1312 = vld [vmem:[#allocation2 + $0x58] sm:$0xff]
      %v1313 = vld [vmem:[#allocation2 + $0x60] sm:$0xff]
      %v1314 = vld [vmem:[#allocation2 + $0x68] sm:$0xff]
      %v1315 = vld [vmem:[#allocation2 + $0x70] sm:$0xff]
      %v1316 = vld [vmem:[#allocation2 + $0x78] sm:$0xff]
      %v1317 = vld [vmem:[#allocation2 + $0x80] sm:$0xff]
      %v1318 = vld [vmem:[#allocation2 + $0x88] sm:$0xff]
      %v1319 = vld [vmem:[#allocation2 + $0x90] sm:$0xff]
      %v1320 = vld [vmem:[#allocation2 + $0x98] sm:$0xff]
      %v1321 = vld [vmem:[#allocation2 + $0xa0] sm:$0xff]
      %v1322 = vld [vmem:[#allocation2 + $0xa8] sm:$0xff]
      %v1323 = vld [vmem:[#allocation2 + $0xb0] sm:$0xff]
      %v1324 = vld [vmem:[#allocation2 + $0xb8] sm:$0xff]
      %v1325 = vld [vmem:[#allocation2 + $0xc0] sm:$0xff]
      %v1326 = vld [vmem:[#allocation2 + $0xc8] sm:$0xff]
      %v1327 = vld [vmem:[#allocation2 + $0xd0] sm:$0xff]
      %v1328 = vld [vmem:[#allocation2 + $0xd8] sm:$0xff]
      %v1329 = vld [vmem:[#allocation2 + $0xe0] sm:$0xff]
      %v1330 = vld [vmem:[#allocation2 + $0xe8] sm:$0xff]
      %v1331 = vld [vmem:[#allocation2 + $0xf0] sm:$0xff]
      %v1332 = vld [vmem:[#allocation2 + $0xf8] sm:$0xff]
      %v1333 = vadd.f32 %v1301, %v1175
      %v1334 = vadd.f32 %v1302, %v1178
      %v1335 = vadd.f32 %v1303, %v1183
      %v1336 = vadd.f32 %v1304, %v1186
      %v1337 = vadd.f32 %v1305, %v1191
      %v1338 = vadd.f32 %v1306, %v1194
      %v1339 = vadd.f32 %v1307, %v1199
      %v1340 = vadd.f32 %v1308, %v1202
      %v1341 = vadd.f32 %v1309, %v1207
      %v1342 = vadd.f32 %v1310, %v1210
      %v1343 = vadd.f32 %v1311, %v1215
      %v1344 = vadd.f32 %v1312, %v1218
      %v1345 = vadd.f32 %v1313, %v1223
      %v1346 = vadd.f32 %v1314, %v1226
      %v1347 = vadd.f32 %v1315, %v1231
      %v1348 = vadd.f32 %v1316, %v1234
      %v1349 = vadd.f32 %v1317, %v1239
      %v1350 = vadd.f32 %v1318, %v1242
      %v1351 = vadd.f32 %v1319, %v1247
      %v1352 = vadd.f32 %v1320, %v1250
      %v1353 = vadd.f32 %v1321, %v1255
      %v1354 = vadd.f32 %v1322, %v1258
      %v1355 = vadd.f32 %v1323, %v1263
      %v1356 = vadd.f32 %v1324, %v1266
      %v1357 = vadd.f32 %v1325, %v1271
      %v1358 = vadd.f32 %v1326, %v1274
      %v1359 = vadd.f32 %v1327, %v1279
      %v1360 = vadd.f32 %v1328, %v1282
      %v1361 = vadd.f32 %v1329, %v1287
      %v1362 = vadd.f32 %v1330, %v1290
      %v1363 = vadd.f32 %v1331, %v1295
      %v1364 = vadd.f32 %v1332, %v1298
      %1365 = vst.msk [vmem:[#allocation2] sm:$0xff] %vm506, %v1333
      %1366 = vst.msk [vmem:[#allocation2 + $0x8] sm:$0xff] %vm506, %v1334
      %1367 = vst.msk [vmem:[#allocation2 + $0x10] sm:$0xff] %vm506, %v1335
      %1368 = vst.msk [vmem:[#allocation2 + $0x18] sm:$0xff] %vm506, %v1336
      %1369 = vst.msk [vmem:[#allocation2 + $0x20] sm:$0xff] %vm506, %v1337
      %1370 = vst.msk [vmem:[#allocation2 + $0x28] sm:$0xff] %vm506, %v1338
      %1371 = vst.msk [vmem:[#allocation2 + $0x30] sm:$0xff] %vm506, %v1339
      %1372 = vst.msk [vmem:[#allocation2 + $0x38] sm:$0xff] %vm506, %v1340
      %1373 = vst.msk [vmem:[#allocation2 + $0x40] sm:$0xff] %vm506, %v1341
      %1374 = vst.msk [vmem:[#allocation2 + $0x48] sm:$0xff] %vm506, %v1342
      %1375 = vst.msk [vmem:[#allocation2 + $0x50] sm:$0xff] %vm506, %v1343
      %1376 = vst.msk [vmem:[#allocation2 + $0x58] sm:$0xff] %vm506, %v1344
      %1377 = vst.msk [vmem:[#allocation2 + $0x60] sm:$0xff] %vm506, %v1345
      %1378 = vst.msk [vmem:[#allocation2 + $0x68] sm:$0xff] %vm506, %v1346
      %1379 = vst.msk [vmem:[#allocation2 + $0x70] sm:$0xff] %vm506, %v1347
      %1380 = vst.msk [vmem:[#allocation2 + $0x78] sm:$0xff] %vm506, %v1348
      %1381 = vst.msk [vmem:[#allocation2 + $0x80] sm:$0xff] %vm506, %v1349
      %1382 = vst.msk [vmem:[#allocation2 + $0x88] sm:$0xff] %vm506, %v1350
      %1383 = vst.msk [vmem:[#allocation2 + $0x90] sm:$0xff] %vm506, %v1351
      %1384 = vst.msk [vmem:[#allocation2 + $0x98] sm:$0xff] %vm506, %v1352
      %1385 = vst.msk [vmem:[#allocation2 + $0xa0] sm:$0xff] %vm506, %v1353
      %1386 = vst.msk [vmem:[#allocation2 + $0xa8] sm:$0xff] %vm506, %v1354
      %1387 = vst.msk [vmem:[#allocation2 + $0xb0] sm:$0xff] %vm506, %v1355
      %1388 = vst.msk [vmem:[#allocation2 + $0xb8] sm:$0xff] %vm506, %v1356
      %1389 = vst.msk [vmem:[#allocation2 + $0xc0] sm:$0xff] %vm506, %v1357
      %1390 = vst.msk [vmem:[#allocation2 + $0xc8] sm:$0xff] %vm506, %v1358
      %1391 = vst.msk [vmem:[#allocation2 + $0xd0] sm:$0xff] %vm506, %v1359
      %1392 = vst.msk [vmem:[#allocation2 + $0xd8] sm:$0xff] %vm506, %v1360
      %1393 = vst.msk [vmem:[#allocation2 + $0xe0] sm:$0xff] %vm506, %v1361
      %1394 = vst.msk [vmem:[#allocation2 + $0xe8] sm:$0xff] %vm506, %v1362
      %1395 = vst.msk [vmem:[#allocation2 + $0xf0] sm:$0xff] %vm506, %v1363
      %1396 = vst.msk [vmem:[#allocation2 + $0xf8] sm:$0xff] %vm506, %v1364
      %v1397 = vld [vmem:[#allocation2] sm:$0xff]
      %v1398 = vld [vmem:[#allocation2 + $0x8] sm:$0xff]
      %v1399 = vld [vmem:[#allocation2 + $0x10] sm:$0xff]
      %v1400 = vld [vmem:[#allocation2 + $0x18] sm:$0xff]
      %v1401 = vld [vmem:[#allocation2 + $0x20] sm:$0xff]
      %v1402 = vld [vmem:[#allocation2 + $0x28] sm:$0xff]
      %v1403 = vld [vmem:[#allocation2 + $0x30] sm:$0xff]
      %v1404 = vld [vmem:[#allocation2 + $0x38] sm:$0xff]
      %v1405 = vld [vmem:[#allocation2 + $0x40] sm:$0xff]
      %v1406 = vld [vmem:[#allocation2 + $0x48] sm:$0xff]
      %v1407 = vld [vmem:[#allocation2 + $0x50] sm:$0xff]
      %v1408 = vld [vmem:[#allocation2 + $0x58] sm:$0xff]
      %v1409 = vld [vmem:[#allocation2 + $0x60] sm:$0xff]
      %v1410 = vld [vmem:[#allocation2 + $0x68] sm:$0xff]
      %v1411 = vld [vmem:[#allocation2 + $0x70] sm:$0xff]
      %v1412 = vld [vmem:[#allocation2 + $0x78] sm:$0xff]
      %v1413 = vld [vmem:[#allocation2 + $0x80] sm:$0xff]
      %v1414 = vld [vmem:[#allocation2 + $0x88] sm:$0xff]
      %v1415 = vld [vmem:[#allocation2 + $0x90] sm:$0xff]
      %v1416 = vld [vmem:[#allocation2 + $0x98] sm:$0xff]
      %v1417 = vld [vmem:[#allocation2 + $0xa0] sm:$0xff]
      %v1418 = vld [vmem:[#allocation2 + $0xa8] sm:$0xff]
      %v1419 = vld [vmem:[#allocation2 + $0xb0] sm:$0xff]
      %v1420 = vld [vmem:[#allocation2 + $0xb8] sm:$0xff]
      %v1421 = vld [vmem:[#allocation2 + $0xc0] sm:$0xff]
      %v1422 = vld [vmem:[#allocation2 + $0xc8] sm:$0xff]
      %v1423 = vld [vmem:[#allocation2 + $0xd0] sm:$0xff]
      %v1424 = vld [vmem:[#allocation2 + $0xd8] sm:$0xff]
      %v1425 = vld [vmem:[#allocation2 + $0xe0] sm:$0xff]
      %v1426 = vld [vmem:[#allocation2 + $0xe8] sm:$0xff]
      %v1427 = vld [vmem:[#allocation2 + $0xf0] sm:$0xff]
      %v1428 = vld [vmem:[#allocation2 + $0xf8] sm:$0xff]
      %s1429 = sld [smem:[#allocation3]]
      %v1430 = vstv %s1429
      %v1431 = vmul.f32 %v1397, %v1430
      %v1432 = vmul.f32 %v1398, %v1430
      %v1433 = vmul.f32 %v1399, %v1430
      %v1434 = vmul.f32 %v1400, %v1430
      %v1435 = vmul.f32 %v1401, %v1430
      %v1436 = vmul.f32 %v1402, %v1430
      %v1437 = vmul.f32 %v1403, %v1430
      %v1438 = vmul.f32 %v1404, %v1430
      %v1439 = vmul.f32 %v1405, %v1430
      %v1440 = vmul.f32 %v1406, %v1430
      %v1441 = vmul.f32 %v1407, %v1430
      %v1442 = vmul.f32 %v1408, %v1430
      %v1443 = vmul.f32 %v1409, %v1430
      %v1444 = vmul.f32 %v1410, %v1430
      %v1445 = vmul.f32 %v1411, %v1430
      %v1446 = vmul.f32 %v1412, %v1430
      %v1447 = vmul.f32 %v1413, %v1430
      %v1448 = vmul.f32 %v1414, %v1430
      %v1449 = vmul.f32 %v1415, %v1430
      %v1450 = vmul.f32 %v1416, %v1430
      %v1451 = vmul.f32 %v1417, %v1430
      %v1452 = vmul.f32 %v1418, %v1430
      %v1453 = vmul.f32 %v1419, %v1430
      %v1454 = vmul.f32 %v1420, %v1430
      %v1455 = vmul.f32 %v1421, %v1430
      %v1456 = vmul.f32 %v1422, %v1430
      %v1457 = vmul.f32 %v1423, %v1430
      %v1458 = vmul.f32 %v1424, %v1430
      %v1459 = vmul.f32 %v1425, %v1430
      %v1460 = vmul.f32 %v1426, %v1430
      %v1461 = vmul.f32 %v1427, %v1430
      %v1462 = vmul.f32 %v1428, %v1430
      %1463 = vst.msk [vmem:[%s171] sm:$0xff] %vm506, %v1431
      %1464 = vst.msk [vmem:[%s171 + $0x8] sm:$0xff] %vm506, %v1432
      %1465 = vst.msk [vmem:[%s171 + $0x10] sm:$0xff] %vm506, %v1433
      %1466 = vst.msk [vmem:[%s171 + $0x18] sm:$0xff] %vm506, %v1434
      %1467 = vst.msk [vmem:[%s171 + $0x20] sm:$0xff] %vm506, %v1435
      %1468 = vst.msk [vmem:[%s171 + $0x28] sm:$0xff] %vm506, %v1436
      %1469 = vst.msk [vmem:[%s171 + $0x30] sm:$0xff] %vm506, %v1437
      %1470 = vst.msk [vmem:[%s171 + $0x38] sm:$0xff] %vm506, %v1438
      %1471 = vst.msk [vmem:[%s171 + $0x40] sm:$0xff] %vm506, %v1439
      %1472 = vst.msk [vmem:[%s171 + $0x48] sm:$0xff] %vm506, %v1440
      %1473 = vst.msk [vmem:[%s171 + $0x50] sm:$0xff] %vm506, %v1441
      %1474 = vst.msk [vmem:[%s171 + $0x58] sm:$0xff] %vm506, %v1442
      %1475 = vst.msk [vmem:[%s171 + $0x60] sm:$0xff] %vm506, %v1443
      %1476 = vst.msk [vmem:[%s171 + $0x68] sm:$0xff] %vm506, %v1444
      %1477 = vst.msk [vmem:[%s171 + $0x70] sm:$0xff] %vm506, %v1445
      %1478 = vst.msk [vmem:[%s171 + $0x78] sm:$0xff] %vm506, %v1446
      %1479 = vst.msk [vmem:[%s171 + $0x80] sm:$0xff] %vm506, %v1447
      %1480 = vst.msk [vmem:[%s171 + $0x88] sm:$0xff] %vm506, %v1448
      %1481 = vst.msk [vmem:[%s171 + $0x90] sm:$0xff] %vm506, %v1449
      %1482 = vst.msk [vmem:[%s171 + $0x98] sm:$0xff] %vm506, %v1450
      %1483 = vst.msk [vmem:[%s171 + $0xa0] sm:$0xff] %vm506, %v1451
      %1484 = vst.msk [vmem:[%s171 + $0xa8] sm:$0xff] %vm506, %v1452
      %1485 = vst.msk [vmem:[%s171 + $0xb0] sm:$0xff] %vm506, %v1453
      %1486 = vst.msk [vmem:[%s171 + $0xb8] sm:$0xff] %vm506, %v1454
      %1487 = vst.msk [vmem:[%s171 + $0xc0] sm:$0xff] %vm506, %v1455
      %1488 = vst.msk [vmem:[%s171 + $0xc8] sm:$0xff] %vm506, %v1456
      %1489 = vst.msk [vmem:[%s171 + $0xd0] sm:$0xff] %vm506, %v1457
      %1490 = vst.msk [vmem:[%s171 + $0xd8] sm:$0xff] %vm506, %v1458
      %1491 = vst.msk [vmem:[%s171 + $0xe0] sm:$0xff] %vm506, %v1459
      %1492 = vst.msk [vmem:[%s171 + $0xe8] sm:$0xff] %vm506, %v1460
      %1493 = vst.msk [vmem:[%s171 + $0xf0] sm:$0xff] %vm506, %v1461
      %1494 = vst.msk [vmem:[%s171 + $0xf8] sm:$0xff] %vm506, %v1462
      %p1495 = scmp.lt.s32.totalorder %s15, 1
      %s1496 = scalar_select %p1495, %s15, 1
      %s1497 = smul.addr %s1496, 32
      %s1498 = smul.addr %s1497, 8
      %s1499 = scalar_lea.vmem %s3, %s1498
      // Predicated region
      $region33: #{tpu_custom_call.1} parent=31 // pred_check
        %p1500 = pneg %p101
      $region34: #{tpu_custom_call.1} parent=31 // pred_check_branch
        %1502 = sbr.rel (%p1500) target = $region36
      $region35: #{tpu_custom_call.1} parent=31 // pred_region
        _
      $region36: #{tpu_custom_call.1} parent=31 // pred_fallthru
        _
    $region32: #{tpu_custom_call.1} parent=5 // pred_fallthru
      _
    %p1503 = scmp.le.s32.totalorder 2, %s10
    // Predicated region
    $region37: #{tpu_custom_call.1} parent=5 // pred_check
      %p1504 = pneg %p1503
    $region38: #{tpu_custom_call.1} parent=5 // pred_check_branch
      %1506 = sbr.rel (%p1504) target = $region40
    $region39: #{tpu_custom_call.1} parent=5 // pred_region
      %s1507 = ssub.s32 %s10, 2
      // Predicated region
      $region41: #{tpu_custom_call.1} parent=39 // pred_check
        %p1508 = pneg %p107
      $region42: #{tpu_custom_call.1} parent=39 // pred_check_branch
        %1510 = sbr.rel (%p1508) target = $region44
      $region43: #{tpu_custom_call.1} parent=39 // pred_region
        %p1511 = scmp.lt.s32.totalorder %s16, 1
        %s1512 = scalar_select %p1511, %s16, 1
        %s1513 = smul.addr %s1512, 32
        %s1514 = smul.addr %s1513, 8
        %s1515 = scalar_lea.vmem %s3, %s1514
      $region44: #{tpu_custom_call.1} parent=39 // pred_fallthru
        _
    $region40: #{tpu_custom_call.1} parent=5 // pred_fallthru
      _
  $region6: #{tpu_custom_call.1} parent=0 // loop_footer
    %s14 = sadd.s32 1, %s10
  $region7: #{tpu_custom_call.1} parent=0 // loop_footer_branch
    %9 = sbr.rel target = $region3
  $region8: #{tpu_custom_call.1} parent=0 // loop_exit
    _

</llo_original>
